<compile_context>
chip_gen: v6e
topology: v6e:2x2x1
jax: 0.10.0
libtpu: 0.0.40
codegen_flags: <defaults>
</compile_context>

<pallas_src>
import jax
import jax.numpy as jnp
from jax.experimental import pallas as pl
from jax.experimental.pallas import tpu as pltpu


def _maxpool2x2_kernel(x_ref, o_ref):
    # x_ref: (b, bh, w)  -- bh input rows of b (n*c) slices (bh even, or full
    #                       odd H when the slice is untiled).
    # o_ref: (b, bh//2, w//2)  or lane-dense (b, (bh//2)*(w//2)).
    b, bh, w = x_ref.shape
    bho, wo = bh // 2, w // 2

    # Row-pair max via sublane-strided ref loads (rows 0,2,4,... vs 1,3,5,...).
    top = x_ref[:, pl.ds(0, bho, stride=2), :]
    bot = x_ref[:, pl.ds(1, bho, stride=2), :]
    r = jnp.maximum(top, bot)                       # (b, bho, w)

    if w != 2 * wo:                                 # odd W: drop trailing col
        r = r[:, :, : 2 * wo]

    # Column-pair max: adjacent lane pairs exposed on a trailing axis.
    p = jnp.max(r.reshape(b, bho, wo, 2), axis=-1)  # (b, bho, wo)

    if o_ref.ndim == 2:
        # Lane-dense flattened store (contiguous HBM writeback).
        o_ref[...] = p.reshape(b, bho * wo)
    else:
        o_ref[...] = p


def _tpu_vmem_capacity_bytes():
    try:
        info = pltpu.get_tpu_info()
        for name in ("vmem_capacity_bytes", "vmem_size_bytes", "vmem_bytes"):
            v = getattr(info, name, None)
            if v:
                return int(v)
    except Exception:
        pass
    return 64 << 20  # conservative default (v7x per-TensorCore VMEM)


def _cdiv(a, b):
    return -(-a // b)


def _pick_bnc(nc, cap):
    """Slices per grid step for the 'whole slices per block' path."""
    if cap >= nc:
        return nc
    if cap < 8:
        return max(1, cap)
    cands = list(range((cap // 8) * 8, 7, -8))  # multiples of 8, descending
    # Prefer an even step count >= 4 (keeps both v7x TensorCores busy/balanced).
    for b in cands:
        s = _cdiv(nc, b)
        if s >= 4 and s % 2 == 0:
            return b
    for b in cands:
        if _cdiv(nc, b) >= 4:
            return b
    return cands[0]


def maxpool2x2(x):
    """nn.MaxPool2d(kernel_size=2, stride=2), floor mode, NCHW layout."""
    N, C, H, W = x.shape
    Ho, Wo = H // 2, W // 2
    if Ho == 0 or Wo == 0:
        return jnp.zeros((N, C, Ho, Wo), dtype=x.dtype)

    NC = N * C
    xv = x.reshape(NC, H, W)                  # free, contiguity-preserving
    itemsize = jnp.dtype(x.dtype).itemsize

    vmem_cap = _tpu_vmem_capacity_bytes()
    small_vmem = vmem_cap <= (64 << 20)       # v7x-class parts
    vmem_limit = (48 << 20) if small_vmem else (64 << 20)
    block_target = (8 << 20) if small_vmem else (16 << 20)

    cost = pl.CostEstimate(
        flops=3 * NC * Ho * Wo,
        transcendentals=0,
        bytes_accessed=(NC * H * W + NC * Ho * Wo) * itemsize,
    )

    def cparams(sem):
        return pltpu.CompilerParams(
            dimension_semantics=sem, vmem_limit_bytes=vmem_limit)

    slice_bytes = H * W * itemsize

    if slice_bytes > block_target:
        # Large images: tile H in 8-aligned output-row chunks as well as NC.
        bho = max(8, (block_target // (2 * W * itemsize)) // 8 * 8)
        grid = (NC, _cdiv(Ho, bho))
        out = pl.pallas_call(
            _maxpool2x2_kernel,
            out_shape=jax.ShapeDtypeStruct((NC, Ho, Wo), x.dtype),
            grid_spec=pltpu.PrefetchScalarGridSpec(
                num_scalar_prefetch=0,
                grid=grid,
                in_specs=[pl.BlockSpec((1, 2 * bho, W), lambda i, h: (i, h, 0))],
                out_specs=pl.BlockSpec((1, bho, Wo), lambda i, h: (i, h, 0)),
            ),
            compiler_params=cparams(("parallel", "parallel")),
            cost_estimate=cost,
        )(xv)
        return out.reshape(N, C, Ho, Wo)

    # Whole slices per block; 1-D cdiv grid over NC (trailing block partial).
    bnc = _pick_bnc(NC, max(1, block_target // max(1, slice_bytes)))
    grid = (_cdiv(NC, bnc),)
    in_spec = pl.BlockSpec((bnc, H, W), lambda i: (i, 0, 0))

    def call(flat):
        if flat:
            out_shape = jax.ShapeDtypeStruct((NC, Ho * Wo), x.dtype)
            out_spec = pl.BlockSpec((bnc, Ho * Wo), lambda i: (i, 0))
        else:
            out_shape = jax.ShapeDtypeStruct((NC, Ho, Wo), x.dtype)
            out_spec = pl.BlockSpec((bnc, Ho, Wo), lambda i: (i, 0, 0))
        out = pl.pallas_call(
            _maxpool2x2_kernel,
            out_shape=out_shape,
            grid_spec=pltpu.PrefetchScalarGridSpec(
                num_scalar_prefetch=0,
                grid=grid,
                in_specs=[in_spec],
                out_specs=out_spec,
            ),
            compiler_params=cparams(("parallel",)),
            cost_estimate=cost,
        )(xv)
        return jax.block_until_ready(out)

    # Lane-dense flattened output only helps when Wo is lane-sparse, and the
    # (8,128) block rule requires bnc to be 8-aligned or the full NC extent.
    want_flat = (Wo % 128 != 0) and (bnc % 8 == 0 or bnc == NC)
    if want_flat:
        try:
            out = call(flat=True)
        except Exception:
            # The (b, Ho, Wo) -> (b, Ho*Wo) flatten may not lower on every
            # toolchain; fall back to the plain 3-D store (still correct).
            out = call(flat=False)
    else:
        out = call(flat=False)
    return out.reshape(N, C, Ho, Wo)


if __name__ == "__main__":
    key = jax.random.PRNGKey(0)
    # MaxPoolBlock has no learnable parameters, so nothing to initialize.
    N, C, H, W = 2, 4, 16, 16
    x = jax.random.normal(key, (N, C, H, W), dtype=jnp.float32)

    y = jax.block_until_ready(maxpool2x2(x))

    # Reference check (pure JAX) for the exact PyTorch semantics.
    ref = jnp.max(x.reshape(N, C, H // 2, 2, W // 2, 2), axis=(3, 5))
    assert y.shape == (N, C, H // 2, W // 2), y.shape
    assert y.dtype == x.dtype
    assert jnp.allclose(y, ref), "mismatch vs reference maxpool"

    print("KERNEL_OK")
</pallas_src>

<mosaic_0001>
module attributes {stable_mosaic.version = 11 : i64} {
  func.func @_maxpool2x2_kernel(%arg0: i32, %arg1: memref<8x16x16xf32, #tpu.memory_space<vmem>>, %arg2: memref<8x64xf32, #tpu.memory_space<vmem>>) attributes {dimension_semantics = [#tpu.dimension_semantics<parallel>], iteration_bounds = array<i64: 1>, scalar_prefetch = 0 : i64, scratch_operands = 0 : i64, tpu.core_type = #tpu.core_type<tc>, window_params = [{transform_indices = @transform_0, window_bounds = array<i64: 8, 16, 16>}, {transform_indices = @transform_1, window_bounds = array<i64: 8, 64>}]} {
    %c0 = arith.constant 0 : index
    %c0_0 = arith.constant 0 : index
    %c0_1 = arith.constant 0 : index
    %0 = tpu.strided_load %arg1[%c0, %c0_0, %c0_1] {strides = array<i32: 1, 2, 1>} : memref<8x16x16xf32, #tpu.memory_space<vmem>>, vector<8x8x16xf32>
    %c0_2 = arith.constant 0 : index
    %c1 = arith.constant 1 : index
    %c0_3 = arith.constant 0 : index
    %1 = tpu.strided_load %arg1[%c0_2, %c1, %c0_3] {strides = array<i32: 1, 2, 1>} : memref<8x16x16xf32, #tpu.memory_space<vmem>>, vector<8x8x16xf32>
    %2 = arith.maximumf %0, %1 : vector<8x8x16xf32>
    %3 = vector.shape_cast %2 : vector<8x8x16xf32> to vector<8x8x8x2xf32>
    %cst = arith.constant dense<0xFF800000> : vector<8x8x8xf32>
    %4 = vector.multi_reduction <maximumf>, %3, %cst [3] : vector<8x8x8x2xf32> to vector<8x8x8xf32>
    %5 = vector.shape_cast %4 : vector<8x8x8xf32> to vector<8x64xf32>
    %c0_4 = arith.constant 0 : index
    %c0_5 = arith.constant 0 : index
    %6 = vector.load %arg2[%c0_4, %c0_5] : memref<8x64xf32, #tpu.memory_space<vmem>>, vector<8x64xf32>
    tpu.vector_store %arg2[%c0_4, %c0_5], %5 {strides = array<i32>} : memref<8x64xf32, #tpu.memory_space<vmem>>, vector<8x64xf32>,
    return
  }
  func.func @transform_0(%arg0: i32) -> (i32, i32, i32) {
    %c0_i32 = arith.constant 0 : i32
    %c0_i32_0 = arith.constant 0 : i32
    %c0_i32_1 = arith.constant 0 : i32
    return %arg0, %c0_i32, %c0_i32_0 : i32, i32, i32
  }
  func.func @transform_1(%arg0: i32) -> (i32, i32) {
    %c0_i32 = arith.constant 0 : i32
    %c0_i32_0 = arith.constant 0 : i32
    return %arg0, %c0_i32 : i32, i32
  }
}

module attributes {stable_mosaic.version = 11 : i64} {
  func.func @_maxpool2x2_kernel(%arg0: i32, %arg1: memref<8x16x16xf32, #tpu.memory_space<vmem>>, %arg2: memref<8x8x8xf32, #tpu.memory_space<vmem>>) attributes {dimension_semantics = [#tpu.dimension_semantics<parallel>], iteration_bounds = array<i64: 1>, scalar_prefetch = 0 : i64, scratch_operands = 0 : i64, tpu.core_type = #tpu.core_type<tc>, window_params = [{transform_indices = @transform_0, window_bounds = array<i64: 8, 16, 16>}, {transform_indices = @transform_1, window_bounds = array<i64: 8, 8, 8>}]} {
    %c0 = arith.constant 0 : index
    %c0_0 = arith.constant 0 : index
    %c0_1 = arith.constant 0 : index
    %0 = tpu.strided_load %arg1[%c0, %c0_0, %c0_1] {strides = array<i32: 1, 2, 1>} : memref<8x16x16xf32, #tpu.memory_space<vmem>>, vector<8x8x16xf32>
    %c0_2 = arith.constant 0 : index
    %c1 = arith.constant 1 : index
    %c0_3 = arith.constant 0 : index
    %1 = tpu.strided_load %arg1[%c0_2, %c1, %c0_3] {strides = array<i32: 1, 2, 1>} : memref<8x16x16xf32, #tpu.memory_space<vmem>>, vector<8x8x16xf32>
    %2 = arith.maximumf %0, %1 : vector<8x8x16xf32>
    %3 = vector.shape_cast %2 : vector<8x8x16xf32> to vector<8x8x8x2xf32>
    %cst = arith.constant dense<0xFF800000> : vector<8x8x8xf32>
    %4 = vector.multi_reduction <maximumf>, %3, %cst [3] : vector<8x8x8x2xf32> to vector<8x8x8xf32>
    %c0_4 = arith.constant 0 : index
    %c0_5 = arith.constant 0 : index
    %c0_6 = arith.constant 0 : index
    %5 = vector.load %arg2[%c0_4, %c0_5, %c0_6] : memref<8x8x8xf32, #tpu.memory_space<vmem>>, vector<8x8x8xf32>
    tpu.vector_store %arg2[%c0_4, %c0_5, %c0_6], %4 {strides = array<i32>} : memref<8x8x8xf32, #tpu.memory_space<vmem>>, vector<8x8x8xf32>,
    return
  }
  func.func @transform_0(%arg0: i32) -> (i32, i32, i32) {
    %c0_i32 = arith.constant 0 : i32
    %c0_i32_0 = arith.constant 0 : i32
    %c0_i32_1 = arith.constant 0 : i32
    return %arg0, %c0_i32, %c0_i32_0 : i32, i32, i32
  }
  func.func @transform_1(%arg0: i32) -> (i32, i32, i32) {
    %c0_i32 = arith.constant 0 : i32
    %c0_i32_0 = arith.constant 0 : i32
    %c0_i32_1 = arith.constant 0 : i32
    return %arg0, %c0_i32, %c0_i32_0 : i32, i32, i32
  }
}

</mosaic_0001>

<llo_original>
// kernel: tpu_custom_call.1
$region0: #{tpu_custom_call.1}
  #allocation0 [shape = 'u32[]', space=smem, size = 0x4, offset = 0x4, fixed_abs, tag = 'smem constant byte address 0x4 - core index']
  #allocation1 [shape = 'u32[144,128]{1,0:T(1,128)}', space=vmem, size = 0x12000, scoped, tag = 'internal scratch']
  %s0 = inlined_call_operand.hbm [shape: f32[8,16,16], index: 0, kind: input, shape index: {}]
  %s1 = inlined_call_operand.hbm [shape: f32[8,64], index: 1, kind: output, shape index: {}]
  %s2 = sld [smem:[#allocation0]]
  $region18: #{tpu_custom_call.1} parent=0
    _
  %s4 = ssub.s32 1, %s2
  %s5 = scalar_select 0, %s4, %s2
  $region1: #{tpu_custom_call.1} parent=0
    #allocation2 [shape = 'u8[65536]{0}', space=vmem, size = 0x10000, scoped, tag = 'input window, operand 0, single buffered']
    #allocation3 [shape = 's32[1]{0}', space=sflag, size = 0x4, scoped, tag = 'scoped memory for tpu_custom_call.1']
    #allocation4 [shape = 's32[1]{0}', space=sflag, size = 0x4, scoped, tag = 'scoped memory for tpu_custom_call.1']
    #allocation5 [shape = 'u8[4096]{0}', space=vmem, size = 0x1000, scoped, tag = 'output window, operand 0, single buffered']
    %6 = vsyncpa [#allocation3], 0
    %7 = vsyncpa [#allocation4], 0
    // Predicated region
    $region2: #{tpu_custom_call.1} parent=1 // pred_check
      _
    $region3: #{tpu_custom_call.1} parent=1 // pred_check_branch
      %9 = sbr.rel (0) target = $region5
    $region4: #{tpu_custom_call.1} parent=1 // pred_region
      %s11 = ssub.s32 2048, 2048
      %12 = vsyncadd [#allocation3], %s11
      %s13 = sshll.u32 [#allocation2], 4
      %s14 = int_to_ptr.vmem [resolvable:$true] %s13
      %19 = dma.hbm_to_vmem [thread:$0]  %s0, 2048, %s14, [#allocation3], 128, 128, 8
    $region5: #{tpu_custom_call.1} parent=1 // pred_fallthru
      _
    // Predicated region
    $region6: #{tpu_custom_call.1} parent=1 // pred_check
      _
    $region7: #{tpu_custom_call.1} parent=1 // pred_check_branch
      %21 = sbr.rel (0) target = $region9
    $region8: #{tpu_custom_call.1} parent=1 // pred_region
      %22 = dma.done [#allocation3], 2048
    $region9: #{tpu_custom_call.1} parent=1 // pred_fallthru
      _
    %v23 = vld [vmem:[#allocation2] ss:$2 sm:$0xff]
    %s24 = scalar_lea.vmem [#allocation2], 16
    %v25 = vld [vmem:[%s24] ss:$2 sm:$0xff]
    %s26 = scalar_lea.vmem [#allocation2], 32
    %v27 = vld [vmem:[%s26] ss:$2 sm:$0xff]
    %s28 = scalar_lea.vmem [#allocation2], 48
    %v29 = vld [vmem:[%s28] ss:$2 sm:$0xff]
    %s30 = scalar_lea.vmem [#allocation2], 64
    %v31 = vld [vmem:[%s30] ss:$2 sm:$0xff]
    %s32 = scalar_lea.vmem [#allocation2], 80
    %v33 = vld [vmem:[%s32] ss:$2 sm:$0xff]
    %s34 = scalar_lea.vmem [#allocation2], 96
    %v35 = vld [vmem:[%s34] ss:$2 sm:$0xff]
    %s36 = scalar_lea.vmem [#allocation2], 112
    %v37 = vld [vmem:[%s36] ss:$2 sm:$0xff]
    %s38 = scalar_lea.vmem [#allocation2], 1
    %v39 = vld [vmem:[%s38] ss:$2 sm:$0xff]
    %s40 = scalar_lea.vmem [#allocation2], 17
    %v41 = vld [vmem:[%s40] ss:$2 sm:$0xff]
    %s42 = scalar_lea.vmem [#allocation2], 33
    %v43 = vld [vmem:[%s42] ss:$2 sm:$0xff]
    %s44 = scalar_lea.vmem [#allocation2], 49
    %v45 = vld [vmem:[%s44] ss:$2 sm:$0xff]
    %s46 = scalar_lea.vmem [#allocation2], 65
    %v47 = vld [vmem:[%s46] ss:$2 sm:$0xff]
    %s48 = scalar_lea.vmem [#allocation2], 81
    %v49 = vld [vmem:[%s48] ss:$2 sm:$0xff]
    %s50 = scalar_lea.vmem [#allocation2], 97
    %v51 = vld [vmem:[%s50] ss:$2 sm:$0xff]
    %s52 = scalar_lea.vmem [#allocation2], 113
    %v53 = vld [vmem:[%s52] ss:$2 sm:$0xff]
    %v54 = vmax.f32 %v23, %v39
    %v55 = vmax.f32 %v25, %v41
    %v56 = vmax.f32 %v27, %v43
    %v57 = vmax.f32 %v29, %v45
    %v58 = vmax.f32 %v31, %v47
    %v59 = vmax.f32 %v33, %v49
    %v60 = vmax.f32 %v35, %v51
    %v61 = vmax.f32 %v37, %v53
    %70 = vrot.lane.b32.xlu0 %v54, 126
    %v71 = vpop.permute.xlu0 %70
    %72 = vrot.lane.b32.xlu0 %v55, 126
    %v73 = vpop.permute.xlu0 %72
    %74 = vrot.lane.b32.xlu0 %v56, 126
    %v75 = vpop.permute.xlu0 %74
    %76 = vrot.lane.b32.xlu0 %v57, 126
    %v77 = vpop.permute.xlu0 %76
    %78 = vrot.lane.b32.xlu0 %v58, 126
    %v79 = vpop.permute.xlu0 %78
    %80 = vrot.lane.b32.xlu0 %v59, 126
    %v81 = vpop.permute.xlu0 %80
    %82 = vrot.lane.b32.xlu0 %v60, 126
    %v83 = vpop.permute.xlu0 %82
    %84 = vrot.lane.b32.xlu0 %v61, 126
    %v85 = vpop.permute.xlu0 %84
    %94 = vrot.lane.b32.xlu0 %v54, 124
    %v95 = vpop.permute.xlu0 %94
    %96 = vrot.lane.b32.xlu0 %v55, 124
    %v97 = vpop.permute.xlu0 %96
    %98 = vrot.lane.b32.xlu0 %v56, 124
    %v99 = vpop.permute.xlu0 %98
    %100 = vrot.lane.b32.xlu0 %v57, 124
    %v101 = vpop.permute.xlu0 %100
    %102 = vrot.lane.b32.xlu0 %v58, 124
    %v103 = vpop.permute.xlu0 %102
    %104 = vrot.lane.b32.xlu0 %v59, 124
    %v105 = vpop.permute.xlu0 %104
    %106 = vrot.lane.b32.xlu0 %v60, 124
    %v107 = vpop.permute.xlu0 %106
    %108 = vrot.lane.b32.xlu0 %v61, 124
    %v109 = vpop.permute.xlu0 %108
    %118 = vrot.lane.b32.xlu0 %v54, 122
    %v119 = vpop.permute.xlu0 %118
    %120 = vrot.lane.b32.xlu0 %v55, 122
    %v121 = vpop.permute.xlu0 %120
    %122 = vrot.lane.b32.xlu0 %v56, 122
    %v123 = vpop.permute.xlu0 %122
    %124 = vrot.lane.b32.xlu0 %v57, 122
    %v125 = vpop.permute.xlu0 %124
    %126 = vrot.lane.b32.xlu0 %v58, 122
    %v127 = vpop.permute.xlu0 %126
    %128 = vrot.lane.b32.xlu0 %v59, 122
    %v129 = vpop.permute.xlu0 %128
    %130 = vrot.lane.b32.xlu0 %v60, 122
    %v131 = vpop.permute.xlu0 %130
    %132 = vrot.lane.b32.xlu0 %v61, 122
    %v133 = vpop.permute.xlu0 %132
    %142 = vrot.lane.b32.xlu0 %v54, 120
    %v143 = vpop.permute.xlu0 %142
    %144 = vrot.lane.b32.xlu0 %v55, 120
    %v145 = vpop.permute.xlu0 %144
    %146 = vrot.lane.b32.xlu0 %v56, 120
    %v147 = vpop.permute.xlu0 %146
    %148 = vrot.lane.b32.xlu0 %v57, 120
    %v149 = vpop.permute.xlu0 %148
    %150 = vrot.lane.b32.xlu0 %v58, 120
    %v151 = vpop.permute.xlu0 %150
    %152 = vrot.lane.b32.xlu0 %v59, 120
    %v153 = vpop.permute.xlu0 %152
    %154 = vrot.lane.b32.xlu0 %v60, 120
    %v155 = vpop.permute.xlu0 %154
    %156 = vrot.lane.b32.xlu0 %v61, 120
    %v157 = vpop.permute.xlu0 %156
    %166 = vrot.lane.b32.xlu0 %v54, 118
    %v167 = vpop.permute.xlu0 %166
    %168 = vrot.lane.b32.xlu0 %v55, 118
    %v169 = vpop.permute.xlu0 %168
    %170 = vrot.lane.b32.xlu0 %v56, 118
    %v171 = vpop.permute.xlu0 %170
    %172 = vrot.lane.b32.xlu0 %v57, 118
    %v173 = vpop.permute.xlu0 %172
    %174 = vrot.lane.b32.xlu0 %v58, 118
    %v175 = vpop.permute.xlu0 %174
    %176 = vrot.lane.b32.xlu0 %v59, 118
    %v177 = vpop.permute.xlu0 %176
    %178 = vrot.lane.b32.xlu0 %v60, 118
    %v179 = vpop.permute.xlu0 %178
    %180 = vrot.lane.b32.xlu0 %v61, 118
    %v181 = vpop.permute.xlu0 %180
    %190 = vrot.lane.b32.xlu0 %v54, 116
    %v191 = vpop.permute.xlu0 %190
    %192 = vrot.lane.b32.xlu0 %v55, 116
    %v193 = vpop.permute.xlu0 %192
    %194 = vrot.lane.b32.xlu0 %v56, 116
    %v195 = vpop.permute.xlu0 %194
    %196 = vrot.lane.b32.xlu0 %v57, 116
    %v197 = vpop.permute.xlu0 %196
    %198 = vrot.lane.b32.xlu0 %v58, 116
    %v199 = vpop.permute.xlu0 %198
    %200 = vrot.lane.b32.xlu0 %v59, 116
    %v201 = vpop.permute.xlu0 %200
    %202 = vrot.lane.b32.xlu0 %v60, 116
    %v203 = vpop.permute.xlu0 %202
    %204 = vrot.lane.b32.xlu0 %v61, 116
    %v205 = vpop.permute.xlu0 %204
    %214 = vrot.lane.b32.xlu0 %v54, 114
    %v215 = vpop.permute.xlu0 %214
    %216 = vrot.lane.b32.xlu0 %v55, 114
    %v217 = vpop.permute.xlu0 %216
    %218 = vrot.lane.b32.xlu0 %v56, 114
    %v219 = vpop.permute.xlu0 %218
    %220 = vrot.lane.b32.xlu0 %v57, 114
    %v221 = vpop.permute.xlu0 %220
    %222 = vrot.lane.b32.xlu0 %v58, 114
    %v223 = vpop.permute.xlu0 %222
    %224 = vrot.lane.b32.xlu0 %v59, 114
    %v225 = vpop.permute.xlu0 %224
    %226 = vrot.lane.b32.xlu0 %v60, 114
    %v227 = vpop.permute.xlu0 %226
    %228 = vrot.lane.b32.xlu0 %v61, 114
    %v229 = vpop.permute.xlu0 %228
    %v238 = vcombine.low %v54, %v95
    %v239 = vcombine.high %v54, %v95
    %v241 = vunpack.c.l.s4 1983009808
    %v242 = vunpack.c.0.s8 %v241
    %v243 = vlaneseq
    %v244 = vshrl.u32 %v243, 7
    %v245 = vsub.s32 %v242, %v244
    %v246 = vrot.slane %v238, %v245
    %v248 = vunpack.c.l.s4 1983009808
    %v249 = vunpack.c.0.s8 %v248
    %v250 = vlaneseq
    %v251 = vshrl.u32 %v250, 7
    %v252 = vsub.s32 %v249, %v251
    %v253 = vrot.slane %v239, %v252
    %v254 = vcombine.low %v71, %v119
    %v255 = vcombine.high %v71, %v119
    %v257 = vunpack.c.l.s4 1983009808
    %v258 = vunpack.c.0.s8 %v257
    %v259 = vlaneseq
    %v260 = vshrl.u32 %v259, 7
    %v261 = vsub.s32 %v258, %v260
    %v262 = vrot.slane %v254, %v261
    %v264 = vunpack.c.l.s4 1983009808
    %v265 = vunpack.c.0.s8 %v264
    %v266 = vlaneseq
    %v267 = vshrl.u32 %v266, 7
    %v268 = vsub.s32 %v265, %v267
    %v269 = vrot.slane %v255, %v268
    %v270 = vcombine.low %v143, %v191
    %v271 = vcombine.high %v143, %v191
    %v273 = vunpack.c.l.s4 1983009808
    %v274 = vunpack.c.0.s8 %v273
    %v275 = vlaneseq
    %v276 = vshrl.u32 %v275, 7
    %v277 = vsub.s32 %v274, %v276
    %v278 = vrot.slane %v270, %v277
    %v280 = vunpack.c.l.s4 1983009808
    %v281 = vunpack.c.0.s8 %v280
    %v282 = vlaneseq
    %v283 = vshrl.u32 %v282, 7
    %v284 = vsub.s32 %v281, %v283
    %v285 = vrot.slane %v271, %v284
    %v286 = vcombine.low %v167, %v215
    %v287 = vcombine.high %v167, %v215
    %v289 = vunpack.c.l.s4 1983009808
    %v290 = vunpack.c.0.s8 %v289
    %v291 = vlaneseq
    %v292 = vshrl.u32 %v291, 7
    %v293 = vsub.s32 %v290, %v292
    %v294 = vrot.slane %v286, %v293
    %v296 = vunpack.c.l.s4 1983009808
    %v297 = vunpack.c.0.s8 %v296
    %v298 = vlaneseq
    %v299 = vshrl.u32 %v298, 7
    %v300 = vsub.s32 %v297, %v299
    %v301 = vrot.slane %v287, %v300
    %v302 = vcombine.low %v246, %v262
    %v303 = vcombine.high %v246, %v262
    %v305 = vunpack.c.l.s4 1934713408
    %v306 = vunpack.c.0.s8 %v305
    %v307 = vlaneseq
    %v308 = vshrl.u32 %v307, 7
    %v309 = vsub.s32 %v306, %v308
    %v310 = vrot.slane %v302, %v309
    %v312 = vunpack.c.l.s4 1934713408
    %v313 = vunpack.c.0.s8 %v312
    %v314 = vlaneseq
    %v315 = vshrl.u32 %v314, 7
    %v316 = vsub.s32 %v313, %v315
    %v317 = vrot.slane %v303, %v316
    %v318 = vcombine.low %v253, %v269
    %v319 = vcombine.high %v253, %v269
    %v321 = vunpack.c.l.s4 1934713408
    %v322 = vunpack.c.0.s8 %v321
    %v323 = vlaneseq
    %v324 = vshrl.u32 %v323, 7
    %v325 = vsub.s32 %v322, %v324
    %v326 = vrot.slane %v318, %v325
    %v328 = vunpack.c.l.s4 1934713408
    %v329 = vunpack.c.0.s8 %v328
    %v330 = vlaneseq
    %v331 = vshrl.u32 %v330, 7
    %v332 = vsub.s32 %v329, %v331
    %v333 = vrot.slane %v319, %v332
    %v334 = vcombine.low %v278, %v294
    %v335 = vcombine.high %v278, %v294
    %v337 = vunpack.c.l.s4 1934713408
    %v338 = vunpack.c.0.s8 %v337
    %v339 = vlaneseq
    %v340 = vshrl.u32 %v339, 7
    %v341 = vsub.s32 %v338, %v340
    %v342 = vrot.slane %v334, %v341
    %v344 = vunpack.c.l.s4 1934713408
    %v345 = vunpack.c.0.s8 %v344
    %v346 = vlaneseq
    %v347 = vshrl.u32 %v346, 7
    %v348 = vsub.s32 %v345, %v347
    %v349 = vrot.slane %v335, %v348
    %v350 = vcombine.low %v285, %v301
    %v351 = vcombine.high %v285, %v301
    %v353 = vunpack.c.l.s4 1934713408
    %v354 = vunpack.c.0.s8 %v353
    %v355 = vlaneseq
    %v356 = vshrl.u32 %v355, 7
    %v357 = vsub.s32 %v354, %v356
    %v358 = vrot.slane %v350, %v357
    %v360 = vunpack.c.l.s4 1934713408
    %v361 = vunpack.c.0.s8 %v360
    %v362 = vlaneseq
    %v363 = vshrl.u32 %v362, 7
    %v364 = vsub.s32 %v361, %v363
    %v365 = vrot.slane %v351, %v364
    %v366 = vcombine.low %v310, %v342
    %v367 = vcombine.high %v310, %v342
    %v368 = vcombine.low %v317, %v349
    %v369 = vcombine.high %v317, %v349
    %v370 = vcombine.low %v326, %v358
    %v371 = vcombine.high %v326, %v358
    %v372 = vcombine.low %v333, %v365
    %v373 = vcombine.high %v333, %v365
    %v374 = vcombine.low %v55, %v97
    %v375 = vcombine.high %v55, %v97
    %v377 = vunpack.c.l.s4 1983009808
    %v378 = vunpack.c.0.s8 %v377
    %v379 = vlaneseq
    %v380 = vshrl.u32 %v379, 7
    %v381 = vsub.s32 %v378, %v380
    %v382 = vrot.slane %v374, %v381
    %v384 = vunpack.c.l.s4 1983009808
    %v385 = vunpack.c.0.s8 %v384
    %v386 = vlaneseq
    %v387 = vshrl.u32 %v386, 7
    %v388 = vsub.s32 %v385, %v387
    %v389 = vrot.slane %v375, %v388
    %v390 = vcombine.low %v73, %v121
    %v391 = vcombine.high %v73, %v121
    %v393 = vunpack.c.l.s4 1983009808
    %v394 = vunpack.c.0.s8 %v393
    %v395 = vlaneseq
    %v396 = vshrl.u32 %v395, 7
    %v397 = vsub.s32 %v394, %v396
    %v398 = vrot.slane %v390, %v397
    %v400 = vunpack.c.l.s4 1983009808
    %v401 = vunpack.c.0.s8 %v400
    %v402 = vlaneseq
    %v403 = vshrl.u32 %v402, 7
    %v404 = vsub.s32 %v401, %v403
    %v405 = vrot.slane %v391, %v404
    %v406 = vcombine.low %v145, %v193
    %v407 = vcombine.high %v145, %v193
    %v409 = vunpack.c.l.s4 1983009808
    %v410 = vunpack.c.0.s8 %v409
    %v411 = vlaneseq
    %v412 = vshrl.u32 %v411, 7
    %v413 = vsub.s32 %v410, %v412
    %v414 = vrot.slane %v406, %v413
    %v416 = vunpack.c.l.s4 1983009808
    %v417 = vunpack.c.0.s8 %v416
    %v418 = vlaneseq
    %v419 = vshrl.u32 %v418, 7
    %v420 = vsub.s32 %v417, %v419
    %v421 = vrot.slane %v407, %v420
    %v422 = vcombine.low %v169, %v217
    %v423 = vcombine.high %v169, %v217
    %v425 = vunpack.c.l.s4 1983009808
    %v426 = vunpack.c.0.s8 %v425
    %v427 = vlaneseq
    %v428 = vshrl.u32 %v427, 7
    %v429 = vsub.s32 %v426, %v428
    %v430 = vrot.slane %v422, %v429
    %v432 = vunpack.c.l.s4 1983009808
    %v433 = vunpack.c.0.s8 %v432
    %v434 = vlaneseq
    %v435 = vshrl.u32 %v434, 7
    %v436 = vsub.s32 %v433, %v435
    %v437 = vrot.slane %v423, %v436
    %v438 = vcombine.low %v382, %v398
    %v439 = vcombine.high %v382, %v398
    %v441 = vunpack.c.l.s4 1934713408
    %v442 = vunpack.c.0.s8 %v441
    %v443 = vlaneseq
    %v444 = vshrl.u32 %v443, 7
    %v445 = vsub.s32 %v442, %v444
    %v446 = vrot.slane %v438, %v445
    %v448 = vunpack.c.l.s4 1934713408
    %v449 = vunpack.c.0.s8 %v448
    %v450 = vlaneseq
    %v451 = vshrl.u32 %v450, 7
    %v452 = vsub.s32 %v449, %v451
    %v453 = vrot.slane %v439, %v452
    %v454 = vcombine.low %v389, %v405
    %v455 = vcombine.high %v389, %v405
    %v457 = vunpack.c.l.s4 1934713408
    %v458 = vunpack.c.0.s8 %v457
    %v459 = vlaneseq
    %v460 = vshrl.u32 %v459, 7
    %v461 = vsub.s32 %v458, %v460
    %v462 = vrot.slane %v454, %v461
    %v464 = vunpack.c.l.s4 1934713408
    %v465 = vunpack.c.0.s8 %v464
    %v466 = vlaneseq
    %v467 = vshrl.u32 %v466, 7
    %v468 = vsub.s32 %v465, %v467
    %v469 = vrot.slane %v455, %v468
    %v470 = vcombine.low %v414, %v430
    %v471 = vcombine.high %v414, %v430
    %v473 = vunpack.c.l.s4 1934713408
    %v474 = vunpack.c.0.s8 %v473
    %v475 = vlaneseq
    %v476 = vshrl.u32 %v475, 7
    %v477 = vsub.s32 %v474, %v476
    %v478 = vrot.slane %v470, %v477
    %v480 = vunpack.c.l.s4 1934713408
    %v481 = vunpack.c.0.s8 %v480
    %v482 = vlaneseq
    %v483 = vshrl.u32 %v482, 7
    %v484 = vsub.s32 %v481, %v483
    %v485 = vrot.slane %v471, %v484
    %v486 = vcombine.low %v421, %v437
    %v487 = vcombine.high %v421, %v437
    %v489 = vunpack.c.l.s4 1934713408
    %v490 = vunpack.c.0.s8 %v489
    %v491 = vlaneseq
    %v492 = vshrl.u32 %v491, 7
    %v493 = vsub.s32 %v490, %v492
    %v494 = vrot.slane %v486, %v493
    %v496 = vunpack.c.l.s4 1934713408
    %v497 = vunpack.c.0.s8 %v496
    %v498 = vlaneseq
    %v499 = vshrl.u32 %v498, 7
    %v500 = vsub.s32 %v497, %v499
    %v501 = vrot.slane %v487, %v500
    %v502 = vcombine.low %v446, %v478
    %v503 = vcombine.high %v446, %v478
    %v504 = vcombine.low %v453, %v485
    %v505 = vcombine.high %v453, %v485
    %v506 = vcombine.low %v462, %v494
    %v507 = vcombine.high %v462, %v494
    %v508 = vcombine.low %v469, %v501
    %v509 = vcombine.high %v469, %v501
    %v510 = vcombine.low %v56, %v99
    %v511 = vcombine.high %v56, %v99
    %v513 = vunpack.c.l.s4 1983009808
    %v514 = vunpack.c.0.s8 %v513
    %v515 = vlaneseq
    %v516 = vshrl.u32 %v515, 7
    %v517 = vsub.s32 %v514, %v516
    %v518 = vrot.slane %v510, %v517
    %v520 = vunpack.c.l.s4 1983009808
    %v521 = vunpack.c.0.s8 %v520
    %v522 = vlaneseq
    %v523 = vshrl.u32 %v522, 7
    %v524 = vsub.s32 %v521, %v523
    %v525 = vrot.slane %v511, %v524
    %v526 = vcombine.low %v75, %v123
    %v527 = vcombine.high %v75, %v123
    %v529 = vunpack.c.l.s4 1983009808
    %v530 = vunpack.c.0.s8 %v529
    %v531 = vlaneseq
    %v532 = vshrl.u32 %v531, 7
    %v533 = vsub.s32 %v530, %v532
    %v534 = vrot.slane %v526, %v533
    %v536 = vunpack.c.l.s4 1983009808
    %v537 = vunpack.c.0.s8 %v536
    %v538 = vlaneseq
    %v539 = vshrl.u32 %v538, 7
    %v540 = vsub.s32 %v537, %v539
    %v541 = vrot.slane %v527, %v540
    %v542 = vcombine.low %v147, %v195
    %v543 = vcombine.high %v147, %v195
    %v545 = vunpack.c.l.s4 1983009808
    %v546 = vunpack.c.0.s8 %v545
    %v547 = vlaneseq
    %v548 = vshrl.u32 %v547, 7
    %v549 = vsub.s32 %v546, %v548
    %v550 = vrot.slane %v542, %v549
    %v552 = vunpack.c.l.s4 1983009808
    %v553 = vunpack.c.0.s8 %v552
    %v554 = vlaneseq
    %v555 = vshrl.u32 %v554, 7
    %v556 = vsub.s32 %v553, %v555
    %v557 = vrot.slane %v543, %v556
    %v558 = vcombine.low %v171, %v219
    %v559 = vcombine.high %v171, %v219
    %v561 = vunpack.c.l.s4 1983009808
    %v562 = vunpack.c.0.s8 %v561
    %v563 = vlaneseq
    %v564 = vshrl.u32 %v563, 7
    %v565 = vsub.s32 %v562, %v564
    %v566 = vrot.slane %v558, %v565
    %v568 = vunpack.c.l.s4 1983009808
    %v569 = vunpack.c.0.s8 %v568
    %v570 = vlaneseq
    %v571 = vshrl.u32 %v570, 7
    %v572 = vsub.s32 %v569, %v571
    %v573 = vrot.slane %v559, %v572
    %v574 = vcombine.low %v518, %v534
    %v575 = vcombine.high %v518, %v534
    %v577 = vunpack.c.l.s4 1934713408
    %v578 = vunpack.c.0.s8 %v577
    %v579 = vlaneseq
    %v580 = vshrl.u32 %v579, 7
    %v581 = vsub.s32 %v578, %v580
    %v582 = vrot.slane %v574, %v581
    %v584 = vunpack.c.l.s4 1934713408
    %v585 = vunpack.c.0.s8 %v584
    %v586 = vlaneseq
    %v587 = vshrl.u32 %v586, 7
    %v588 = vsub.s32 %v585, %v587
    %v589 = vrot.slane %v575, %v588
    %v590 = vcombine.low %v525, %v541
    %v591 = vcombine.high %v525, %v541
    %v593 = vunpack.c.l.s4 1934713408
    %v594 = vunpack.c.0.s8 %v593
    %v595 = vlaneseq
    %v596 = vshrl.u32 %v595, 7
    %v597 = vsub.s32 %v594, %v596
    %v598 = vrot.slane %v590, %v597
    %v600 = vunpack.c.l.s4 1934713408
    %v601 = vunpack.c.0.s8 %v600
    %v602 = vlaneseq
    %v603 = vshrl.u32 %v602, 7
    %v604 = vsub.s32 %v601, %v603
    %v605 = vrot.slane %v591, %v604
    %v606 = vcombine.low %v550, %v566
    %v607 = vcombine.high %v550, %v566
    %v609 = vunpack.c.l.s4 1934713408
    %v610 = vunpack.c.0.s8 %v609
    %v611 = vlaneseq
    %v612 = vshrl.u32 %v611, 7
    %v613 = vsub.s32 %v610, %v612
    %v614 = vrot.slane %v606, %v613
    %v616 = vunpack.c.l.s4 1934713408
    %v617 = vunpack.c.0.s8 %v616
    %v618 = vlaneseq
    %v619 = vshrl.u32 %v618, 7
    %v620 = vsub.s32 %v617, %v619
    %v621 = vrot.slane %v607, %v620
    %v622 = vcombine.low %v557, %v573
    %v623 = vcombine.high %v557, %v573
    %v625 = vunpack.c.l.s4 1934713408
    %v626 = vunpack.c.0.s8 %v625
    %v627 = vlaneseq
    %v628 = vshrl.u32 %v627, 7
    %v629 = vsub.s32 %v626, %v628
    %v630 = vrot.slane %v622, %v629
    %v632 = vunpack.c.l.s4 1934713408
    %v633 = vunpack.c.0.s8 %v632
    %v634 = vlaneseq
    %v635 = vshrl.u32 %v634, 7
    %v636 = vsub.s32 %v633, %v635
    %v637 = vrot.slane %v623, %v636
    %v638 = vcombine.low %v582, %v614
    %v639 = vcombine.high %v582, %v614
    %v640 = vcombine.low %v589, %v621
    %v641 = vcombine.high %v589, %v621
    %v642 = vcombine.low %v598, %v630
    %v643 = vcombine.high %v598, %v630
    %v644 = vcombine.low %v605, %v637
    %v645 = vcombine.high %v605, %v637
    %v646 = vcombine.low %v57, %v101
    %v647 = vcombine.high %v57, %v101
    %v649 = vunpack.c.l.s4 1983009808
    %v650 = vunpack.c.0.s8 %v649
    %v651 = vlaneseq
    %v652 = vshrl.u32 %v651, 7
    %v653 = vsub.s32 %v650, %v652
    %v654 = vrot.slane %v646, %v653
    %v656 = vunpack.c.l.s4 1983009808
    %v657 = vunpack.c.0.s8 %v656
    %v658 = vlaneseq
    %v659 = vshrl.u32 %v658, 7
    %v660 = vsub.s32 %v657, %v659
    %v661 = vrot.slane %v647, %v660
    %v662 = vcombine.low %v77, %v125
    %v663 = vcombine.high %v77, %v125
    %v665 = vunpack.c.l.s4 1983009808
    %v666 = vunpack.c.0.s8 %v665
    %v667 = vlaneseq
    %v668 = vshrl.u32 %v667, 7
    %v669 = vsub.s32 %v666, %v668
    %v670 = vrot.slane %v662, %v669
    %v672 = vunpack.c.l.s4 1983009808
    %v673 = vunpack.c.0.s8 %v672
    %v674 = vlaneseq
    %v675 = vshrl.u32 %v674, 7
    %v676 = vsub.s32 %v673, %v675
    %v677 = vrot.slane %v663, %v676
    %v678 = vcombine.low %v149, %v197
    %v679 = vcombine.high %v149, %v197
    %v681 = vunpack.c.l.s4 1983009808
    %v682 = vunpack.c.0.s8 %v681
    %v683 = vlaneseq
    %v684 = vshrl.u32 %v683, 7
    %v685 = vsub.s32 %v682, %v684
    %v686 = vrot.slane %v678, %v685
    %v688 = vunpack.c.l.s4 1983009808
    %v689 = vunpack.c.0.s8 %v688
    %v690 = vlaneseq
    %v691 = vshrl.u32 %v690, 7
    %v692 = vsub.s32 %v689, %v691
    %v693 = vrot.slane %v679, %v692
    %v694 = vcombine.low %v173, %v221
    %v695 = vcombine.high %v173, %v221
    %v697 = vunpack.c.l.s4 1983009808
    %v698 = vunpack.c.0.s8 %v697
    %v699 = vlaneseq
    %v700 = vshrl.u32 %v699, 7
    %v701 = vsub.s32 %v698, %v700
    %v702 = vrot.slane %v694, %v701
    %v704 = vunpack.c.l.s4 1983009808
    %v705 = vunpack.c.0.s8 %v704
    %v706 = vlaneseq
    %v707 = vshrl.u32 %v706, 7
    %v708 = vsub.s32 %v705, %v707
    %v709 = vrot.slane %v695, %v708
    %v710 = vcombine.low %v654, %v670
    %v711 = vcombine.high %v654, %v670
    %v713 = vunpack.c.l.s4 1934713408
    %v714 = vunpack.c.0.s8 %v713
    %v715 = vlaneseq
    %v716 = vshrl.u32 %v715, 7
    %v717 = vsub.s32 %v714, %v716
    %v718 = vrot.slane %v710, %v717
    %v720 = vunpack.c.l.s4 1934713408
    %v721 = vunpack.c.0.s8 %v720
    %v722 = vlaneseq
    %v723 = vshrl.u32 %v722, 7
    %v724 = vsub.s32 %v721, %v723
    %v725 = vrot.slane %v711, %v724
    %v726 = vcombine.low %v661, %v677
    %v727 = vcombine.high %v661, %v677
    %v729 = vunpack.c.l.s4 1934713408
    %v730 = vunpack.c.0.s8 %v729
    %v731 = vlaneseq
    %v732 = vshrl.u32 %v731, 7
    %v733 = vsub.s32 %v730, %v732
    %v734 = vrot.slane %v726, %v733
    %v736 = vunpack.c.l.s4 1934713408
    %v737 = vunpack.c.0.s8 %v736
    %v738 = vlaneseq
    %v739 = vshrl.u32 %v738, 7
    %v740 = vsub.s32 %v737, %v739
    %v741 = vrot.slane %v727, %v740
    %v742 = vcombine.low %v686, %v702
    %v743 = vcombine.high %v686, %v702
    %v745 = vunpack.c.l.s4 1934713408
    %v746 = vunpack.c.0.s8 %v745
    %v747 = vlaneseq
    %v748 = vshrl.u32 %v747, 7
    %v749 = vsub.s32 %v746, %v748
    %v750 = vrot.slane %v742, %v749
    %v752 = vunpack.c.l.s4 1934713408
    %v753 = vunpack.c.0.s8 %v752
    %v754 = vlaneseq
    %v755 = vshrl.u32 %v754, 7
    %v756 = vsub.s32 %v753, %v755
    %v757 = vrot.slane %v743, %v756
    %v758 = vcombine.low %v693, %v709
    %v759 = vcombine.high %v693, %v709
    %v761 = vunpack.c.l.s4 1934713408
    %v762 = vunpack.c.0.s8 %v761
    %v763 = vlaneseq
    %v764 = vshrl.u32 %v763, 7
    %v765 = vsub.s32 %v762, %v764
    %v766 = vrot.slane %v758, %v765
    %v768 = vunpack.c.l.s4 1934713408
    %v769 = vunpack.c.0.s8 %v768
    %v770 = vlaneseq
    %v771 = vshrl.u32 %v770, 7
    %v772 = vsub.s32 %v769, %v771
    %v773 = vrot.slane %v759, %v772
    %v774 = vcombine.low %v718, %v750
    %v775 = vcombine.high %v718, %v750
    %v776 = vcombine.low %v725, %v757
    %v777 = vcombine.high %v725, %v757
    %v778 = vcombine.low %v734, %v766
    %v779 = vcombine.high %v734, %v766
    %v780 = vcombine.low %v741, %v773
    %v781 = vcombine.high %v741, %v773
    %v782 = vcombine.low %v58, %v103
    %v783 = vcombine.high %v58, %v103
    %v785 = vunpack.c.l.s4 1983009808
    %v786 = vunpack.c.0.s8 %v785
    %v787 = vlaneseq
    %v788 = vshrl.u32 %v787, 7
    %v789 = vsub.s32 %v786, %v788
    %v790 = vrot.slane %v782, %v789
    %v792 = vunpack.c.l.s4 1983009808
    %v793 = vunpack.c.0.s8 %v792
    %v794 = vlaneseq
    %v795 = vshrl.u32 %v794, 7
    %v796 = vsub.s32 %v793, %v795
    %v797 = vrot.slane %v783, %v796
    %v798 = vcombine.low %v79, %v127
    %v799 = vcombine.high %v79, %v127
    %v801 = vunpack.c.l.s4 1983009808
    %v802 = vunpack.c.0.s8 %v801
    %v803 = vlaneseq
    %v804 = vshrl.u32 %v803, 7
    %v805 = vsub.s32 %v802, %v804
    %v806 = vrot.slane %v798, %v805
    %v808 = vunpack.c.l.s4 1983009808
    %v809 = vunpack.c.0.s8 %v808
    %v810 = vlaneseq
    %v811 = vshrl.u32 %v810, 7
    %v812 = vsub.s32 %v809, %v811
    %v813 = vrot.slane %v799, %v812
    %v814 = vcombine.low %v151, %v199
    %v815 = vcombine.high %v151, %v199
    %v817 = vunpack.c.l.s4 1983009808
    %v818 = vunpack.c.0.s8 %v817
    %v819 = vlaneseq
    %v820 = vshrl.u32 %v819, 7
    %v821 = vsub.s32 %v818, %v820
    %v822 = vrot.slane %v814, %v821
    %v824 = vunpack.c.l.s4 1983009808
    %v825 = vunpack.c.0.s8 %v824
    %v826 = vlaneseq
    %v827 = vshrl.u32 %v826, 7
    %v828 = vsub.s32 %v825, %v827
    %v829 = vrot.slane %v815, %v828
    %v830 = vcombine.low %v175, %v223
    %v831 = vcombine.high %v175, %v223
    %v833 = vunpack.c.l.s4 1983009808
    %v834 = vunpack.c.0.s8 %v833
    %v835 = vlaneseq
    %v836 = vshrl.u32 %v835, 7
    %v837 = vsub.s32 %v834, %v836
    %v838 = vrot.slane %v830, %v837
    %v840 = vunpack.c.l.s4 1983009808
    %v841 = vunpack.c.0.s8 %v840
    %v842 = vlaneseq
    %v843 = vshrl.u32 %v842, 7
    %v844 = vsub.s32 %v841, %v843
    %v845 = vrot.slane %v831, %v844
    %v846 = vcombine.low %v790, %v806
    %v847 = vcombine.high %v790, %v806
    %v849 = vunpack.c.l.s4 1934713408
    %v850 = vunpack.c.0.s8 %v849
    %v851 = vlaneseq
    %v852 = vshrl.u32 %v851, 7
    %v853 = vsub.s32 %v850, %v852
    %v854 = vrot.slane %v846, %v853
    %v856 = vunpack.c.l.s4 1934713408
    %v857 = vunpack.c.0.s8 %v856
    %v858 = vlaneseq
    %v859 = vshrl.u32 %v858, 7
    %v860 = vsub.s32 %v857, %v859
    %v861 = vrot.slane %v847, %v860
    %v862 = vcombine.low %v797, %v813
    %v863 = vcombine.high %v797, %v813
    %v865 = vunpack.c.l.s4 1934713408
    %v866 = vunpack.c.0.s8 %v865
    %v867 = vlaneseq
    %v868 = vshrl.u32 %v867, 7
    %v869 = vsub.s32 %v866, %v868
    %v870 = vrot.slane %v862, %v869
    %v872 = vunpack.c.l.s4 1934713408
    %v873 = vunpack.c.0.s8 %v872
    %v874 = vlaneseq
    %v875 = vshrl.u32 %v874, 7
    %v876 = vsub.s32 %v873, %v875
    %v877 = vrot.slane %v863, %v876
    %v878 = vcombine.low %v822, %v838
    %v879 = vcombine.high %v822, %v838
    %v881 = vunpack.c.l.s4 1934713408
    %v882 = vunpack.c.0.s8 %v881
    %v883 = vlaneseq
    %v884 = vshrl.u32 %v883, 7
    %v885 = vsub.s32 %v882, %v884
    %v886 = vrot.slane %v878, %v885
    %v888 = vunpack.c.l.s4 1934713408
    %v889 = vunpack.c.0.s8 %v888
    %v890 = vlaneseq
    %v891 = vshrl.u32 %v890, 7
    %v892 = vsub.s32 %v889, %v891
    %v893 = vrot.slane %v879, %v892
    %v894 = vcombine.low %v829, %v845
    %v895 = vcombine.high %v829, %v845
    %v897 = vunpack.c.l.s4 1934713408
    %v898 = vunpack.c.0.s8 %v897
    %v899 = vlaneseq
    %v900 = vshrl.u32 %v899, 7
    %v901 = vsub.s32 %v898, %v900
    %v902 = vrot.slane %v894, %v901
    %v904 = vunpack.c.l.s4 1934713408
    %v905 = vunpack.c.0.s8 %v904
    %v906 = vlaneseq
    %v907 = vshrl.u32 %v906, 7
    %v908 = vsub.s32 %v905, %v907
    %v909 = vrot.slane %v895, %v908
    %v910 = vcombine.low %v854, %v886
    %v911 = vcombine.high %v854, %v886
    %v912 = vcombine.low %v861, %v893
    %v913 = vcombine.high %v861, %v893
    %v914 = vcombine.low %v870, %v902
    %v915 = vcombine.high %v870, %v902
    %v916 = vcombine.low %v877, %v909
    %v917 = vcombine.high %v877, %v909
    %v918 = vcombine.low %v59, %v105
    %v919 = vcombine.high %v59, %v105
    %v921 = vunpack.c.l.s4 1983009808
    %v922 = vunpack.c.0.s8 %v921
    %v923 = vlaneseq
    %v924 = vshrl.u32 %v923, 7
    %v925 = vsub.s32 %v922, %v924
    %v926 = vrot.slane %v918, %v925
    %v928 = vunpack.c.l.s4 1983009808
    %v929 = vunpack.c.0.s8 %v928
    %v930 = vlaneseq
    %v931 = vshrl.u32 %v930, 7
    %v932 = vsub.s32 %v929, %v931
    %v933 = vrot.slane %v919, %v932
    %v934 = vcombine.low %v81, %v129
    %v935 = vcombine.high %v81, %v129
    %v937 = vunpack.c.l.s4 1983009808
    %v938 = vunpack.c.0.s8 %v937
    %v939 = vlaneseq
    %v940 = vshrl.u32 %v939, 7
    %v941 = vsub.s32 %v938, %v940
    %v942 = vrot.slane %v934, %v941
    %v944 = vunpack.c.l.s4 1983009808
    %v945 = vunpack.c.0.s8 %v944
    %v946 = vlaneseq
    %v947 = vshrl.u32 %v946, 7
    %v948 = vsub.s32 %v945, %v947
    %v949 = vrot.slane %v935, %v948
    %v950 = vcombine.low %v153, %v201
    %v951 = vcombine.high %v153, %v201
    %v953 = vunpack.c.l.s4 1983009808
    %v954 = vunpack.c.0.s8 %v953
    %v955 = vlaneseq
    %v956 = vshrl.u32 %v955, 7
    %v957 = vsub.s32 %v954, %v956
    %v958 = vrot.slane %v950, %v957
    %v960 = vunpack.c.l.s4 1983009808
    %v961 = vunpack.c.0.s8 %v960
    %v962 = vlaneseq
    %v963 = vshrl.u32 %v962, 7
    %v964 = vsub.s32 %v961, %v963
    %v965 = vrot.slane %v951, %v964
    %v966 = vcombine.low %v177, %v225
    %v967 = vcombine.high %v177, %v225
    %v969 = vunpack.c.l.s4 1983009808
    %v970 = vunpack.c.0.s8 %v969
    %v971 = vlaneseq
    %v972 = vshrl.u32 %v971, 7
    %v973 = vsub.s32 %v970, %v972
    %v974 = vrot.slane %v966, %v973
    %v976 = vunpack.c.l.s4 1983009808
    %v977 = vunpack.c.0.s8 %v976
    %v978 = vlaneseq
    %v979 = vshrl.u32 %v978, 7
    %v980 = vsub.s32 %v977, %v979
    %v981 = vrot.slane %v967, %v980
    %v982 = vcombine.low %v926, %v942
    %v983 = vcombine.high %v926, %v942
    %v985 = vunpack.c.l.s4 1934713408
    %v986 = vunpack.c.0.s8 %v985
    %v987 = vlaneseq
    %v988 = vshrl.u32 %v987, 7
    %v989 = vsub.s32 %v986, %v988
    %v990 = vrot.slane %v982, %v989
    %v992 = vunpack.c.l.s4 1934713408
    %v993 = vunpack.c.0.s8 %v992
    %v994 = vlaneseq
    %v995 = vshrl.u32 %v994, 7
    %v996 = vsub.s32 %v993, %v995
    %v997 = vrot.slane %v983, %v996
    %v998 = vcombine.low %v933, %v949
    %v999 = vcombine.high %v933, %v949
    %v1001 = vunpack.c.l.s4 1934713408
    %v1002 = vunpack.c.0.s8 %v1001
    %v1003 = vlaneseq
    %v1004 = vshrl.u32 %v1003, 7
    %v1005 = vsub.s32 %v1002, %v1004
    %v1006 = vrot.slane %v998, %v1005
    %v1008 = vunpack.c.l.s4 1934713408
    %v1009 = vunpack.c.0.s8 %v1008
    %v1010 = vlaneseq
    %v1011 = vshrl.u32 %v1010, 7
    %v1012 = vsub.s32 %v1009, %v1011
    %v1013 = vrot.slane %v999, %v1012
    %v1014 = vcombine.low %v958, %v974
    %v1015 = vcombine.high %v958, %v974
    %v1017 = vunpack.c.l.s4 1934713408
    %v1018 = vunpack.c.0.s8 %v1017
    %v1019 = vlaneseq
    %v1020 = vshrl.u32 %v1019, 7
    %v1021 = vsub.s32 %v1018, %v1020
    %v1022 = vrot.slane %v1014, %v1021
    %v1024 = vunpack.c.l.s4 1934713408
    %v1025 = vunpack.c.0.s8 %v1024
    %v1026 = vlaneseq
    %v1027 = vshrl.u32 %v1026, 7
    %v1028 = vsub.s32 %v1025, %v1027
    %v1029 = vrot.slane %v1015, %v1028
    %v1030 = vcombine.low %v965, %v981
    %v1031 = vcombine.high %v965, %v981
    %v1033 = vunpack.c.l.s4 1934713408
    %v1034 = vunpack.c.0.s8 %v1033
    %v1035 = vlaneseq
    %v1036 = vshrl.u32 %v1035, 7
    %v1037 = vsub.s32 %v1034, %v1036
    %v1038 = vrot.slane %v1030, %v1037
    %v1040 = vunpack.c.l.s4 1934713408
    %v1041 = vunpack.c.0.s8 %v1040
    %v1042 = vlaneseq
    %v1043 = vshrl.u32 %v1042, 7
    %v1044 = vsub.s32 %v1041, %v1043
    %v1045 = vrot.slane %v1031, %v1044
    %v1046 = vcombine.low %v990, %v1022
    %v1047 = vcombine.high %v990, %v1022
    %v1048 = vcombine.low %v997, %v1029
    %v1049 = vcombine.high %v997, %v1029
    %v1050 = vcombine.low %v1006, %v1038
    %v1051 = vcombine.high %v1006, %v1038
    %v1052 = vcombine.low %v1013, %v1045
    %v1053 = vcombine.high %v1013, %v1045
    %v1054 = vcombine.low %v60, %v107
    %v1055 = vcombine.high %v60, %v107
    %v1057 = vunpack.c.l.s4 1983009808
    %v1058 = vunpack.c.0.s8 %v1057
    %v1059 = vlaneseq
    %v1060 = vshrl.u32 %v1059, 7
    %v1061 = vsub.s32 %v1058, %v1060
    %v1062 = vrot.slane %v1054, %v1061
    %v1064 = vunpack.c.l.s4 1983009808
    %v1065 = vunpack.c.0.s8 %v1064
    %v1066 = vlaneseq
    %v1067 = vshrl.u32 %v1066, 7
    %v1068 = vsub.s32 %v1065, %v1067
    %v1069 = vrot.slane %v1055, %v1068
    %v1070 = vcombine.low %v83, %v131
    %v1071 = vcombine.high %v83, %v131
    %v1073 = vunpack.c.l.s4 1983009808
    %v1074 = vunpack.c.0.s8 %v1073
    %v1075 = vlaneseq
    %v1076 = vshrl.u32 %v1075, 7
    %v1077 = vsub.s32 %v1074, %v1076
    %v1078 = vrot.slane %v1070, %v1077
    %v1080 = vunpack.c.l.s4 1983009808
    %v1081 = vunpack.c.0.s8 %v1080
    %v1082 = vlaneseq
    %v1083 = vshrl.u32 %v1082, 7
    %v1084 = vsub.s32 %v1081, %v1083
    %v1085 = vrot.slane %v1071, %v1084
    %v1086 = vcombine.low %v155, %v203
    %v1087 = vcombine.high %v155, %v203
    %v1089 = vunpack.c.l.s4 1983009808
    %v1090 = vunpack.c.0.s8 %v1089
    %v1091 = vlaneseq
    %v1092 = vshrl.u32 %v1091, 7
    %v1093 = vsub.s32 %v1090, %v1092
    %v1094 = vrot.slane %v1086, %v1093
    %v1096 = vunpack.c.l.s4 1983009808
    %v1097 = vunpack.c.0.s8 %v1096
    %v1098 = vlaneseq
    %v1099 = vshrl.u32 %v1098, 7
    %v1100 = vsub.s32 %v1097, %v1099
    %v1101 = vrot.slane %v1087, %v1100
    %v1102 = vcombine.low %v179, %v227
    %v1103 = vcombine.high %v179, %v227
    %v1105 = vunpack.c.l.s4 1983009808
    %v1106 = vunpack.c.0.s8 %v1105
    %v1107 = vlaneseq
    %v1108 = vshrl.u32 %v1107, 7
    %v1109 = vsub.s32 %v1106, %v1108
    %v1110 = vrot.slane %v1102, %v1109
    %v1112 = vunpack.c.l.s4 1983009808
    %v1113 = vunpack.c.0.s8 %v1112
    %v1114 = vlaneseq
    %v1115 = vshrl.u32 %v1114, 7
    %v1116 = vsub.s32 %v1113, %v1115
    %v1117 = vrot.slane %v1103, %v1116
    %v1118 = vcombine.low %v1062, %v1078
    %v1119 = vcombine.high %v1062, %v1078
    %v1121 = vunpack.c.l.s4 1934713408
    %v1122 = vunpack.c.0.s8 %v1121
    %v1123 = vlaneseq
    %v1124 = vshrl.u32 %v1123, 7
    %v1125 = vsub.s32 %v1122, %v1124
    %v1126 = vrot.slane %v1118, %v1125
    %v1128 = vunpack.c.l.s4 1934713408
    %v1129 = vunpack.c.0.s8 %v1128
    %v1130 = vlaneseq
    %v1131 = vshrl.u32 %v1130, 7
    %v1132 = vsub.s32 %v1129, %v1131
    %v1133 = vrot.slane %v1119, %v1132
    %v1134 = vcombine.low %v1069, %v1085
    %v1135 = vcombine.high %v1069, %v1085
    %v1137 = vunpack.c.l.s4 1934713408
    %v1138 = vunpack.c.0.s8 %v1137
    %v1139 = vlaneseq
    %v1140 = vshrl.u32 %v1139, 7
    %v1141 = vsub.s32 %v1138, %v1140
    %v1142 = vrot.slane %v1134, %v1141
    %v1144 = vunpack.c.l.s4 1934713408
    %v1145 = vunpack.c.0.s8 %v1144
    %v1146 = vlaneseq
    %v1147 = vshrl.u32 %v1146, 7
    %v1148 = vsub.s32 %v1145, %v1147
    %v1149 = vrot.slane %v1135, %v1148
    %v1150 = vcombine.low %v1094, %v1110
    %v1151 = vcombine.high %v1094, %v1110
    %v1153 = vunpack.c.l.s4 1934713408
    %v1154 = vunpack.c.0.s8 %v1153
    %v1155 = vlaneseq
    %v1156 = vshrl.u32 %v1155, 7
    %v1157 = vsub.s32 %v1154, %v1156
    %v1158 = vrot.slane %v1150, %v1157
    %v1160 = vunpack.c.l.s4 1934713408
    %v1161 = vunpack.c.0.s8 %v1160
    %v1162 = vlaneseq
    %v1163 = vshrl.u32 %v1162, 7
    %v1164 = vsub.s32 %v1161, %v1163
    %v1165 = vrot.slane %v1151, %v1164
    %v1166 = vcombine.low %v1101, %v1117
    %v1167 = vcombine.high %v1101, %v1117
    %v1169 = vunpack.c.l.s4 1934713408
    %v1170 = vunpack.c.0.s8 %v1169
    %v1171 = vlaneseq
    %v1172 = vshrl.u32 %v1171, 7
    %v1173 = vsub.s32 %v1170, %v1172
    %v1174 = vrot.slane %v1166, %v1173
    %v1176 = vunpack.c.l.s4 1934713408
    %v1177 = vunpack.c.0.s8 %v1176
    %v1178 = vlaneseq
    %v1179 = vshrl.u32 %v1178, 7
    %v1180 = vsub.s32 %v1177, %v1179
    %v1181 = vrot.slane %v1167, %v1180
    %v1182 = vcombine.low %v1126, %v1158
    %v1183 = vcombine.high %v1126, %v1158
    %v1184 = vcombine.low %v1133, %v1165
    %v1185 = vcombine.high %v1133, %v1165
    %v1186 = vcombine.low %v1142, %v1174
    %v1187 = vcombine.high %v1142, %v1174
    %v1188 = vcombine.low %v1149, %v1181
    %v1189 = vcombine.high %v1149, %v1181
    %v1190 = vcombine.low %v61, %v109
    %v1191 = vcombine.high %v61, %v109
    %v1193 = vunpack.c.l.s4 1983009808
    %v1194 = vunpack.c.0.s8 %v1193
    %v1195 = vlaneseq
    %v1196 = vshrl.u32 %v1195, 7
    %v1197 = vsub.s32 %v1194, %v1196
    %v1198 = vrot.slane %v1190, %v1197
    %v1200 = vunpack.c.l.s4 1983009808
    %v1201 = vunpack.c.0.s8 %v1200
    %v1202 = vlaneseq
    %v1203 = vshrl.u32 %v1202, 7
    %v1204 = vsub.s32 %v1201, %v1203
    %v1205 = vrot.slane %v1191, %v1204
    %v1206 = vcombine.low %v85, %v133
    %v1207 = vcombine.high %v85, %v133
    %v1209 = vunpack.c.l.s4 1983009808
    %v1210 = vunpack.c.0.s8 %v1209
    %v1211 = vlaneseq
    %v1212 = vshrl.u32 %v1211, 7
    %v1213 = vsub.s32 %v1210, %v1212
    %v1214 = vrot.slane %v1206, %v1213
    %v1216 = vunpack.c.l.s4 1983009808
    %v1217 = vunpack.c.0.s8 %v1216
    %v1218 = vlaneseq
    %v1219 = vshrl.u32 %v1218, 7
    %v1220 = vsub.s32 %v1217, %v1219
    %v1221 = vrot.slane %v1207, %v1220
    %v1222 = vcombine.low %v157, %v205
    %v1223 = vcombine.high %v157, %v205
    %v1225 = vunpack.c.l.s4 1983009808
    %v1226 = vunpack.c.0.s8 %v1225
    %v1227 = vlaneseq
    %v1228 = vshrl.u32 %v1227, 7
    %v1229 = vsub.s32 %v1226, %v1228
    %v1230 = vrot.slane %v1222, %v1229
    %v1232 = vunpack.c.l.s4 1983009808
    %v1233 = vunpack.c.0.s8 %v1232
    %v1234 = vlaneseq
    %v1235 = vshrl.u32 %v1234, 7
    %v1236 = vsub.s32 %v1233, %v1235
    %v1237 = vrot.slane %v1223, %v1236
    %v1238 = vcombine.low %v181, %v229
    %v1239 = vcombine.high %v181, %v229
    %v1241 = vunpack.c.l.s4 1983009808
    %v1242 = vunpack.c.0.s8 %v1241
    %v1243 = vlaneseq
    %v1244 = vshrl.u32 %v1243, 7
    %v1245 = vsub.s32 %v1242, %v1244
    %v1246 = vrot.slane %v1238, %v1245
    %v1248 = vunpack.c.l.s4 1983009808
    %v1249 = vunpack.c.0.s8 %v1248
    %v1250 = vlaneseq
    %v1251 = vshrl.u32 %v1250, 7
    %v1252 = vsub.s32 %v1249, %v1251
    %v1253 = vrot.slane %v1239, %v1252
    %v1254 = vcombine.low %v1198, %v1214
    %v1255 = vcombine.high %v1198, %v1214
    %v1257 = vunpack.c.l.s4 1934713408
    %v1258 = vunpack.c.0.s8 %v1257
    %v1259 = vlaneseq
    %v1260 = vshrl.u32 %v1259, 7
    %v1261 = vsub.s32 %v1258, %v1260
    %v1262 = vrot.slane %v1254, %v1261
    %v1264 = vunpack.c.l.s4 1934713408
    %v1265 = vunpack.c.0.s8 %v1264
    %v1266 = vlaneseq
    %v1267 = vshrl.u32 %v1266, 7
    %v1268 = vsub.s32 %v1265, %v1267
    %v1269 = vrot.slane %v1255, %v1268
    %v1270 = vcombine.low %v1205, %v1221
    %v1271 = vcombine.high %v1205, %v1221
    %v1273 = vunpack.c.l.s4 1934713408
    %v1274 = vunpack.c.0.s8 %v1273
    %v1275 = vlaneseq
    %v1276 = vshrl.u32 %v1275, 7
    %v1277 = vsub.s32 %v1274, %v1276
    %v1278 = vrot.slane %v1270, %v1277
    %v1280 = vunpack.c.l.s4 1934713408
    %v1281 = vunpack.c.0.s8 %v1280
    %v1282 = vlaneseq
    %v1283 = vshrl.u32 %v1282, 7
    %v1284 = vsub.s32 %v1281, %v1283
    %v1285 = vrot.slane %v1271, %v1284
    %v1286 = vcombine.low %v1230, %v1246
    %v1287 = vcombine.high %v1230, %v1246
    %v1289 = vunpack.c.l.s4 1934713408
    %v1290 = vunpack.c.0.s8 %v1289
    %v1291 = vlaneseq
    %v1292 = vshrl.u32 %v1291, 7
    %v1293 = vsub.s32 %v1290, %v1292
    %v1294 = vrot.slane %v1286, %v1293
    %v1296 = vunpack.c.l.s4 1934713408
    %v1297 = vunpack.c.0.s8 %v1296
    %v1298 = vlaneseq
    %v1299 = vshrl.u32 %v1298, 7
    %v1300 = vsub.s32 %v1297, %v1299
    %v1301 = vrot.slane %v1287, %v1300
    %v1302 = vcombine.low %v1237, %v1253
    %v1303 = vcombine.high %v1237, %v1253
    %v1305 = vunpack.c.l.s4 1934713408
    %v1306 = vunpack.c.0.s8 %v1305
    %v1307 = vlaneseq
    %v1308 = vshrl.u32 %v1307, 7
    %v1309 = vsub.s32 %v1306, %v1308
    %v1310 = vrot.slane %v1302, %v1309
    %v1312 = vunpack.c.l.s4 1934713408
    %v1313 = vunpack.c.0.s8 %v1312
    %v1314 = vlaneseq
    %v1315 = vshrl.u32 %v1314, 7
    %v1316 = vsub.s32 %v1313, %v1315
    %v1317 = vrot.slane %v1303, %v1316
    %v1318 = vcombine.low %v1262, %v1294
    %v1319 = vcombine.high %v1262, %v1294
    %v1320 = vcombine.low %v1269, %v1301
    %v1321 = vcombine.high %v1269, %v1301
    %v1322 = vcombine.low %v1278, %v1310
    %v1323 = vcombine.high %v1278, %v1310
    %v1324 = vcombine.low %v1285, %v1317
    %v1325 = vcombine.high %v1285, %v1317
    %vm1326 = vcmask 15360
    %v1327 = vsel %vm1326, %v366, -inf
    %1328 = vmax.xlane.f32.xlu0 %v1327
    %v1329 = vpop.xlane.xlu0 %1328
    %v1330 = vsel %vm1326, %v367, -inf
    %1331 = vmax.xlane.f32.xlu0 %v1330
    %v1332 = vpop.xlane.xlu0 %1331
    %v1333 = vsel %vm1326, %v368, -inf
    %1334 = vmax.xlane.f32.xlu0 %v1333
    %v1335 = vpop.xlane.xlu0 %1334
    %v1336 = vsel %vm1326, %v369, -inf
    %1337 = vmax.xlane.f32.xlu0 %v1336
    %v1338 = vpop.xlane.xlu0 %1337
    %v1339 = vsel %vm1326, %v370, -inf
    %1340 = vmax.xlane.f32.xlu0 %v1339
    %v1341 = vpop.xlane.xlu0 %1340
    %v1342 = vsel %vm1326, %v371, -inf
    %1343 = vmax.xlane.f32.xlu0 %v1342
    %v1344 = vpop.xlane.xlu0 %1343
    %v1345 = vsel %vm1326, %v372, -inf
    %1346 = vmax.xlane.f32.xlu0 %v1345
    %v1347 = vpop.xlane.xlu0 %1346
    %v1348 = vsel %vm1326, %v373, -inf
    %1349 = vmax.xlane.f32.xlu0 %v1348
    %v1350 = vpop.xlane.xlu0 %1349
    %v1351 = vsel %vm1326, %v502, -inf
    %1352 = vmax.xlane.f32.xlu0 %v1351
    %v1353 = vpop.xlane.xlu0 %1352
    %v1354 = vsel %vm1326, %v503, -inf
    %1355 = vmax.xlane.f32.xlu0 %v1354
    %v1356 = vpop.xlane.xlu0 %1355
    %v1357 = vsel %vm1326, %v504, -inf
    %1358 = vmax.xlane.f32.xlu0 %v1357
    %v1359 = vpop.xlane.xlu0 %1358
    %v1360 = vsel %vm1326, %v505, -inf
    %1361 = vmax.xlane.f32.xlu0 %v1360
    %v1362 = vpop.xlane.xlu0 %1361
    %v1363 = vsel %vm1326, %v506, -inf
    %1364 = vmax.xlane.f32.xlu0 %v1363
    %v1365 = vpop.xlane.xlu0 %1364
    %v1366 = vsel %vm1326, %v507, -inf
    %1367 = vmax.xlane.f32.xlu0 %v1366
    %v1368 = vpop.xlane.xlu0 %1367
    %v1369 = vsel %vm1326, %v508, -inf
    %1370 = vmax.xlane.f32.xlu0 %v1369
    %v1371 = vpop.xlane.xlu0 %1370
    %v1372 = vsel %vm1326, %v509, -inf
    %1373 = vmax.xlane.f32.xlu0 %v1372
    %v1374 = vpop.xlane.xlu0 %1373
    %v1375 = vsel %vm1326, %v638, -inf
    %1376 = vmax.xlane.f32.xlu0 %v1375
    %v1377 = vpop.xlane.xlu0 %1376
    %v1378 = vsel %vm1326, %v639, -inf
    %1379 = vmax.xlane.f32.xlu0 %v1378
    %v1380 = vpop.xlane.xlu0 %1379
    %v1381 = vsel %vm1326, %v640, -inf
    %1382 = vmax.xlane.f32.xlu0 %v1381
    %v1383 = vpop.xlane.xlu0 %1382
    %v1384 = vsel %vm1326, %v641, -inf
    %1385 = vmax.xlane.f32.xlu0 %v1384
    %v1386 = vpop.xlane.xlu0 %1385
    %v1387 = vsel %vm1326, %v642, -inf
    %1388 = vmax.xlane.f32.xlu0 %v1387
    %v1389 = vpop.xlane.xlu0 %1388
    %v1390 = vsel %vm1326, %v643, -inf
    %1391 = vmax.xlane.f32.xlu0 %v1390
    %v1392 = vpop.xlane.xlu0 %1391
    %v1393 = vsel %vm1326, %v644, -inf
    %1394 = vmax.xlane.f32.xlu0 %v1393
    %v1395 = vpop.xlane.xlu0 %1394
    %v1396 = vsel %vm1326, %v645, -inf
    %1397 = vmax.xlane.f32.xlu0 %v1396
    %v1398 = vpop.xlane.xlu0 %1397
    %v1399 = vsel %vm1326, %v774, -inf
    %1400 = vmax.xlane.f32.xlu0 %v1399
    %v1401 = vpop.xlane.xlu0 %1400
    %v1402 = vsel %vm1326, %v775, -inf
    %1403 = vmax.xlane.f32.xlu0 %v1402
    %v1404 = vpop.xlane.xlu0 %1403
    %v1405 = vsel %vm1326, %v776, -inf
    %1406 = vmax.xlane.f32.xlu0 %v1405
    %v1407 = vpop.xlane.xlu0 %1406
    %v1408 = vsel %vm1326, %v777, -inf
    %1409 = vmax.xlane.f32.xlu0 %v1408
    %v1410 = vpop.xlane.xlu0 %1409
    %v1411 = vsel %vm1326, %v778, -inf
    %1412 = vmax.xlane.f32.xlu0 %v1411
    %v1413 = vpop.xlane.xlu0 %1412
    %v1414 = vsel %vm1326, %v779, -inf
    %1415 = vmax.xlane.f32.xlu0 %v1414
    %v1416 = vpop.xlane.xlu0 %1415
    %v1417 = vsel %vm1326, %v780, -inf
    %1418 = vmax.xlane.f32.xlu0 %v1417
    %v1419 = vpop.xlane.xlu0 %1418
    %v1420 = vsel %vm1326, %v781, -inf
    %1421 = vmax.xlane.f32.xlu0 %v1420
    %v1422 = vpop.xlane.xlu0 %1421
    %v1423 = vsel %vm1326, %v910, -inf
    %1424 = vmax.xlane.f32.xlu0 %v1423
    %v1425 = vpop.xlane.xlu0 %1424
    %v1426 = vsel %vm1326, %v911, -inf
    %1427 = vmax.xlane.f32.xlu0 %v1426
    %v1428 = vpop.xlane.xlu0 %1427
    %v1429 = vsel %vm1326, %v912, -inf
    %1430 = vmax.xlane.f32.xlu0 %v1429
    %v1431 = vpop.xlane.xlu0 %1430
    %v1432 = vsel %vm1326, %v913, -inf
    %1433 = vmax.xlane.f32.xlu0 %v1432
    %v1434 = vpop.xlane.xlu0 %1433
    %v1435 = vsel %vm1326, %v914, -inf
    %1436 = vmax.xlane.f32.xlu0 %v1435
    %v1437 = vpop.xlane.xlu0 %1436
    %v1438 = vsel %vm1326, %v915, -inf
    %1439 = vmax.xlane.f32.xlu0 %v1438
    %v1440 = vpop.xlane.xlu0 %1439
    %v1441 = vsel %vm1326, %v916, -inf
    %1442 = vmax.xlane.f32.xlu0 %v1441
    %v1443 = vpop.xlane.xlu0 %1442
    %v1444 = vsel %vm1326, %v917, -inf
    %1445 = vmax.xlane.f32.xlu0 %v1444
    %v1446 = vpop.xlane.xlu0 %1445
    %v1447 = vsel %vm1326, %v1046, -inf
    %1448 = vmax.xlane.f32.xlu0 %v1447
    %v1449 = vpop.xlane.xlu0 %1448
    %v1450 = vsel %vm1326, %v1047, -inf
    %1451 = vmax.xlane.f32.xlu0 %v1450
    %v1452 = vpop.xlane.xlu0 %1451
    %v1453 = vsel %vm1326, %v1048, -inf
    %1454 = vmax.xlane.f32.xlu0 %v1453
    %v1455 = vpop.xlane.xlu0 %1454
    %v1456 = vsel %vm1326, %v1049, -inf
    %1457 = vmax.xlane.f32.xlu0 %v1456
    %v1458 = vpop.xlane.xlu0 %1457
    %v1459 = vsel %vm1326, %v1050, -inf
    %1460 = vmax.xlane.f32.xlu0 %v1459
    %v1461 = vpop.xlane.xlu0 %1460
    %v1462 = vsel %vm1326, %v1051, -inf
    %1463 = vmax.xlane.f32.xlu0 %v1462
    %v1464 = vpop.xlane.xlu0 %1463
    %v1465 = vsel %vm1326, %v1052, -inf
    %1466 = vmax.xlane.f32.xlu0 %v1465
    %v1467 = vpop.xlane.xlu0 %1466
    %v1468 = vsel %vm1326, %v1053, -inf
    %1469 = vmax.xlane.f32.xlu0 %v1468
    %v1470 = vpop.xlane.xlu0 %1469
    %v1471 = vsel %vm1326, %v1182, -inf
    %1472 = vmax.xlane.f32.xlu0 %v1471
    %v1473 = vpop.xlane.xlu0 %1472
    %v1474 = vsel %vm1326, %v1183, -inf
    %1475 = vmax.xlane.f32.xlu0 %v1474
    %v1476 = vpop.xlane.xlu0 %1475
    %v1477 = vsel %vm1326, %v1184, -inf
    %1478 = vmax.xlane.f32.xlu0 %v1477
    %v1479 = vpop.xlane.xlu0 %1478
    %v1480 = vsel %vm1326, %v1185, -inf
    %1481 = vmax.xlane.f32.xlu0 %v1480
    %v1482 = vpop.xlane.xlu0 %1481
    %v1483 = vsel %vm1326, %v1186, -inf
    %1484 = vmax.xlane.f32.xlu0 %v1483
    %v1485 = vpop.xlane.xlu0 %1484
    %v1486 = vsel %vm1326, %v1187, -inf
    %1487 = vmax.xlane.f32.xlu0 %v1486
    %v1488 = vpop.xlane.xlu0 %1487
    %v1489 = vsel %vm1326, %v1188, -inf
    %1490 = vmax.xlane.f32.xlu0 %v1489
    %v1491 = vpop.xlane.xlu0 %1490
    %v1492 = vsel %vm1326, %v1189, -inf
    %1493 = vmax.xlane.f32.xlu0 %v1492
    %v1494 = vpop.xlane.xlu0 %1493
    %v1495 = vsel %vm1326, %v1318, -inf
    %1496 = vmax.xlane.f32.xlu0 %v1495
    %v1497 = vpop.xlane.xlu0 %1496
    %v1498 = vsel %vm1326, %v1319, -inf
    %1499 = vmax.xlane.f32.xlu0 %v1498
    %v1500 = vpop.xlane.xlu0 %1499
    %v1501 = vsel %vm1326, %v1320, -inf
    %1502 = vmax.xlane.f32.xlu0 %v1501
    %v1503 = vpop.xlane.xlu0 %1502
    %v1504 = vsel %vm1326, %v1321, -inf
    %1505 = vmax.xlane.f32.xlu0 %v1504
    %v1506 = vpop.xlane.xlu0 %1505
    %v1507 = vsel %vm1326, %v1322, -inf
    %1508 = vmax.xlane.f32.xlu0 %v1507
    %v1509 = vpop.xlane.xlu0 %1508
    %v1510 = vsel %vm1326, %v1323, -inf
    %1511 = vmax.xlane.f32.xlu0 %v1510
    %v1512 = vpop.xlane.xlu0 %1511
    %v1513 = vsel %vm1326, %v1324, -inf
    %1514 = vmax.xlane.f32.xlu0 %v1513
    %v1515 = vpop.xlane.xlu0 %1514
    %v1516 = vsel %vm1326, %v1325, -inf
    %1517 = vmax.xlane.f32.xlu0 %v1516
    %v1518 = vpop.xlane.xlu0 %1517
    %v1583 = vlaneseq
    %v1584 = vand.u32 %v1583, 127
    %v1585 = vlaneseq
    %v1586 = vshrl.u32 %v1585, 7
    %v1587 = vsub.s32 %v1584, %v1586
    %v1588 = vrot.slane %v1329, %v1587
    %v1589 = vlaneseq
    %v1590 = vshrl.u32 %v1589, 7
    %v1591 = vsub.s32 %v1584, %v1590
    %v1592 = vrot.slane %v1332, %v1591
    %v1593 = vlaneseq
    %v1594 = vshrl.u32 %v1593, 7
    %v1595 = vsub.s32 %v1584, %v1594
    %v1596 = vrot.slane %v1335, %v1595
    %v1597 = vlaneseq
    %v1598 = vshrl.u32 %v1597, 7
    %v1599 = vsub.s32 %v1584, %v1598
    %v1600 = vrot.slane %v1338, %v1599
    %v1601 = vlaneseq
    %v1602 = vshrl.u32 %v1601, 7
    %v1603 = vsub.s32 %v1584, %v1602
    %v1604 = vrot.slane %v1341, %v1603
    %v1605 = vlaneseq
    %v1606 = vshrl.u32 %v1605, 7
    %v1607 = vsub.s32 %v1584, %v1606
    %v1608 = vrot.slane %v1344, %v1607
    %v1609 = vlaneseq
    %v1610 = vshrl.u32 %v1609, 7
    %v1611 = vsub.s32 %v1584, %v1610
    %v1612 = vrot.slane %v1347, %v1611
    %v1613 = vlaneseq
    %v1614 = vshrl.u32 %v1613, 7
    %v1615 = vsub.s32 %v1584, %v1614
    %v1616 = vrot.slane %v1350, %v1615
    %v1617 = vlaneseq
    %v1618 = vshrl.u32 %v1617, 7
    %v1619 = vsub.s32 %v1584, %v1618
    %v1620 = vrot.slane %v1353, %v1619
    %v1621 = vlaneseq
    %v1622 = vshrl.u32 %v1621, 7
    %v1623 = vsub.s32 %v1584, %v1622
    %v1624 = vrot.slane %v1356, %v1623
    %v1625 = vlaneseq
    %v1626 = vshrl.u32 %v1625, 7
    %v1627 = vsub.s32 %v1584, %v1626
    %v1628 = vrot.slane %v1359, %v1627
    %v1629 = vlaneseq
    %v1630 = vshrl.u32 %v1629, 7
    %v1631 = vsub.s32 %v1584, %v1630
    %v1632 = vrot.slane %v1362, %v1631
    %v1633 = vlaneseq
    %v1634 = vshrl.u32 %v1633, 7
    %v1635 = vsub.s32 %v1584, %v1634
    %v1636 = vrot.slane %v1365, %v1635
    %v1637 = vlaneseq
    %v1638 = vshrl.u32 %v1637, 7
    %v1639 = vsub.s32 %v1584, %v1638
    %v1640 = vrot.slane %v1368, %v1639
    %v1641 = vlaneseq
    %v1642 = vshrl.u32 %v1641, 7
    %v1643 = vsub.s32 %v1584, %v1642
    %v1644 = vrot.slane %v1371, %v1643
    %v1645 = vlaneseq
    %v1646 = vshrl.u32 %v1645, 7
    %v1647 = vsub.s32 %v1584, %v1646
    %v1648 = vrot.slane %v1374, %v1647
    %v1649 = vlaneseq
    %v1650 = vshrl.u32 %v1649, 7
    %v1651 = vsub.s32 %v1584, %v1650
    %v1652 = vrot.slane %v1377, %v1651
    %v1653 = vlaneseq
    %v1654 = vshrl.u32 %v1653, 7
    %v1655 = vsub.s32 %v1584, %v1654
    %v1656 = vrot.slane %v1380, %v1655
    %v1657 = vlaneseq
    %v1658 = vshrl.u32 %v1657, 7
    %v1659 = vsub.s32 %v1584, %v1658
    %v1660 = vrot.slane %v1383, %v1659
    %v1661 = vlaneseq
    %v1662 = vshrl.u32 %v1661, 7
    %v1663 = vsub.s32 %v1584, %v1662
    %v1664 = vrot.slane %v1386, %v1663
    %v1665 = vlaneseq
    %v1666 = vshrl.u32 %v1665, 7
    %v1667 = vsub.s32 %v1584, %v1666
    %v1668 = vrot.slane %v1389, %v1667
    %v1669 = vlaneseq
    %v1670 = vshrl.u32 %v1669, 7
    %v1671 = vsub.s32 %v1584, %v1670
    %v1672 = vrot.slane %v1392, %v1671
    %v1673 = vlaneseq
    %v1674 = vshrl.u32 %v1673, 7
    %v1675 = vsub.s32 %v1584, %v1674
    %v1676 = vrot.slane %v1395, %v1675
    %v1677 = vlaneseq
    %v1678 = vshrl.u32 %v1677, 7
    %v1679 = vsub.s32 %v1584, %v1678
    %v1680 = vrot.slane %v1398, %v1679
    %v1681 = vlaneseq
    %v1682 = vshrl.u32 %v1681, 7
    %v1683 = vsub.s32 %v1584, %v1682
    %v1684 = vrot.slane %v1401, %v1683
    %v1685 = vlaneseq
    %v1686 = vshrl.u32 %v1685, 7
    %v1687 = vsub.s32 %v1584, %v1686
    %v1688 = vrot.slane %v1404, %v1687
    %v1689 = vlaneseq
    %v1690 = vshrl.u32 %v1689, 7
    %v1691 = vsub.s32 %v1584, %v1690
    %v1692 = vrot.slane %v1407, %v1691
    %v1693 = vlaneseq
    %v1694 = vshrl.u32 %v1693, 7
    %v1695 = vsub.s32 %v1584, %v1694
    %v1696 = vrot.slane %v1410, %v1695
    %v1697 = vlaneseq
    %v1698 = vshrl.u32 %v1697, 7
    %v1699 = vsub.s32 %v1584, %v1698
    %v1700 = vrot.slane %v1413, %v1699
    %v1701 = vlaneseq
    %v1702 = vshrl.u32 %v1701, 7
    %v1703 = vsub.s32 %v1584, %v1702
    %v1704 = vrot.slane %v1416, %v1703
    %v1705 = vlaneseq
    %v1706 = vshrl.u32 %v1705, 7
    %v1707 = vsub.s32 %v1584, %v1706
    %v1708 = vrot.slane %v1419, %v1707
    %v1709 = vlaneseq
    %v1710 = vshrl.u32 %v1709, 7
    %v1711 = vsub.s32 %v1584, %v1710
    %v1712 = vrot.slane %v1422, %v1711
    %v1713 = vlaneseq
    %v1714 = vshrl.u32 %v1713, 7
    %v1715 = vsub.s32 %v1584, %v1714
    %v1716 = vrot.slane %v1425, %v1715
    %v1717 = vlaneseq
    %v1718 = vshrl.u32 %v1717, 7
    %v1719 = vsub.s32 %v1584, %v1718
    %v1720 = vrot.slane %v1428, %v1719
    %v1721 = vlaneseq
    %v1722 = vshrl.u32 %v1721, 7
    %v1723 = vsub.s32 %v1584, %v1722
    %v1724 = vrot.slane %v1431, %v1723
    %v1725 = vlaneseq
    %v1726 = vshrl.u32 %v1725, 7
    %v1727 = vsub.s32 %v1584, %v1726
    %v1728 = vrot.slane %v1434, %v1727
    %v1729 = vlaneseq
    %v1730 = vshrl.u32 %v1729, 7
    %v1731 = vsub.s32 %v1584, %v1730
    %v1732 = vrot.slane %v1437, %v1731
    %v1733 = vlaneseq
    %v1734 = vshrl.u32 %v1733, 7
    %v1735 = vsub.s32 %v1584, %v1734
    %v1736 = vrot.slane %v1440, %v1735
    %v1737 = vlaneseq
    %v1738 = vshrl.u32 %v1737, 7
    %v1739 = vsub.s32 %v1584, %v1738
    %v1740 = vrot.slane %v1443, %v1739
    %v1741 = vlaneseq
    %v1742 = vshrl.u32 %v1741, 7
    %v1743 = vsub.s32 %v1584, %v1742
    %v1744 = vrot.slane %v1446, %v1743
    %v1745 = vlaneseq
    %v1746 = vshrl.u32 %v1745, 7
    %v1747 = vsub.s32 %v1584, %v1746
    %v1748 = vrot.slane %v1449, %v1747
    %v1749 = vlaneseq
    %v1750 = vshrl.u32 %v1749, 7
    %v1751 = vsub.s32 %v1584, %v1750
    %v1752 = vrot.slane %v1452, %v1751
    %v1753 = vlaneseq
    %v1754 = vshrl.u32 %v1753, 7
    %v1755 = vsub.s32 %v1584, %v1754
    %v1756 = vrot.slane %v1455, %v1755
    %v1757 = vlaneseq
    %v1758 = vshrl.u32 %v1757, 7
    %v1759 = vsub.s32 %v1584, %v1758
    %v1760 = vrot.slane %v1458, %v1759
    %v1761 = vlaneseq
    %v1762 = vshrl.u32 %v1761, 7
    %v1763 = vsub.s32 %v1584, %v1762
    %v1764 = vrot.slane %v1461, %v1763
    %v1765 = vlaneseq
    %v1766 = vshrl.u32 %v1765, 7
    %v1767 = vsub.s32 %v1584, %v1766
    %v1768 = vrot.slane %v1464, %v1767
    %v1769 = vlaneseq
    %v1770 = vshrl.u32 %v1769, 7
    %v1771 = vsub.s32 %v1584, %v1770
    %v1772 = vrot.slane %v1467, %v1771
    %v1773 = vlaneseq
    %v1774 = vshrl.u32 %v1773, 7
    %v1775 = vsub.s32 %v1584, %v1774
    %v1776 = vrot.slane %v1470, %v1775
    %v1777 = vlaneseq
    %v1778 = vshrl.u32 %v1777, 7
    %v1779 = vsub.s32 %v1584, %v1778
    %v1780 = vrot.slane %v1473, %v1779
    %v1781 = vlaneseq
    %v1782 = vshrl.u32 %v1781, 7
    %v1783 = vsub.s32 %v1584, %v1782
    %v1784 = vrot.slane %v1476, %v1783
    %v1785 = vlaneseq
    %v1786 = vshrl.u32 %v1785, 7
    %v1787 = vsub.s32 %v1584, %v1786
    %v1788 = vrot.slane %v1479, %v1787
    %v1789 = vlaneseq
    %v1790 = vshrl.u32 %v1789, 7
    %v1791 = vsub.s32 %v1584, %v1790
    %v1792 = vrot.slane %v1482, %v1791
    %v1793 = vlaneseq
    %v1794 = vshrl.u32 %v1793, 7
    %v1795 = vsub.s32 %v1584, %v1794
    %v1796 = vrot.slane %v1485, %v1795
    %v1797 = vlaneseq
    %v1798 = vshrl.u32 %v1797, 7
    %v1799 = vsub.s32 %v1584, %v1798
    %v1800 = vrot.slane %v1488, %v1799
    %v1801 = vlaneseq
    %v1802 = vshrl.u32 %v1801, 7
    %v1803 = vsub.s32 %v1584, %v1802
    %v1804 = vrot.slane %v1491, %v1803
    %v1805 = vlaneseq
    %v1806 = vshrl.u32 %v1805, 7
    %v1807 = vsub.s32 %v1584, %v1806
    %v1808 = vrot.slane %v1494, %v1807
    %v1809 = vlaneseq
    %v1810 = vshrl.u32 %v1809, 7
    %v1811 = vsub.s32 %v1584, %v1810
    %v1812 = vrot.slane %v1497, %v1811
    %v1813 = vlaneseq
    %v1814 = vshrl.u32 %v1813, 7
    %v1815 = vsub.s32 %v1584, %v1814
    %v1816 = vrot.slane %v1500, %v1815
    %v1817 = vlaneseq
    %v1818 = vshrl.u32 %v1817, 7
    %v1819 = vsub.s32 %v1584, %v1818
    %v1820 = vrot.slane %v1503, %v1819
    %v1821 = vlaneseq
    %v1822 = vshrl.u32 %v1821, 7
    %v1823 = vsub.s32 %v1584, %v1822
    %v1824 = vrot.slane %v1506, %v1823
    %v1825 = vlaneseq
    %v1826 = vshrl.u32 %v1825, 7
    %v1827 = vsub.s32 %v1584, %v1826
    %v1828 = vrot.slane %v1509, %v1827
    %v1829 = vlaneseq
    %v1830 = vshrl.u32 %v1829, 7
    %v1831 = vsub.s32 %v1584, %v1830
    %v1832 = vrot.slane %v1512, %v1831
    %v1833 = vlaneseq
    %v1834 = vshrl.u32 %v1833, 7
    %v1835 = vsub.s32 %v1584, %v1834
    %v1836 = vrot.slane %v1515, %v1835
    %v1837 = vlaneseq
    %v1838 = vshrl.u32 %v1837, 7
    %v1839 = vsub.s32 %v1584, %v1838
    %v1840 = vrot.slane %v1518, %v1839
    %vm1841 = vcmask 1041409
    %v1842 = vsel %vm1841, %v1592, %v1588
    %vm1843 = vcmask 1042434
    %v1844 = vsel %vm1843, %v1596, %v1842
    %vm1845 = vcmask 1043459
    %v1846 = vsel %vm1845, %v1600, %v1844
    %vm1847 = vcmask 1044484
    %v1848 = vsel %vm1847, %v1604, %v1846
    %vm1849 = vcmask 1045509
    %v1850 = vsel %vm1849, %v1608, %v1848
    %vm1851 = vcmask 1046534
    %v1852 = vsel %vm1851, %v1612, %v1850
    %vm1853 = vcmask 1047559
    %v1854 = vsel %vm1853, %v1616, %v1852
    %v1855 = vsel %vm1841, %v1624, %v1620
    %v1856 = vsel %vm1843, %v1628, %v1855
    %v1857 = vsel %vm1845, %v1632, %v1856
    %v1858 = vsel %vm1847, %v1636, %v1857
    %v1859 = vsel %vm1849, %v1640, %v1858
    %v1860 = vsel %vm1851, %v1644, %v1859
    %v1861 = vsel %vm1853, %v1648, %v1860
    %v1862 = vsel %vm1841, %v1656, %v1652
    %v1863 = vsel %vm1843, %v1660, %v1862
    %v1864 = vsel %vm1845, %v1664, %v1863
    %v1865 = vsel %vm1847, %v1668, %v1864
    %v1866 = vsel %vm1849, %v1672, %v1865
    %v1867 = vsel %vm1851, %v1676, %v1866
    %v1868 = vsel %vm1853, %v1680, %v1867
    %v1869 = vsel %vm1841, %v1688, %v1684
    %v1870 = vsel %vm1843, %v1692, %v1869
    %v1871 = vsel %vm1845, %v1696, %v1870
    %v1872 = vsel %vm1847, %v1700, %v1871
    %v1873 = vsel %vm1849, %v1704, %v1872
    %v1874 = vsel %vm1851, %v1708, %v1873
    %v1875 = vsel %vm1853, %v1712, %v1874
    %v1876 = vsel %vm1841, %v1720, %v1716
    %v1877 = vsel %vm1843, %v1724, %v1876
    %v1878 = vsel %vm1845, %v1728, %v1877
    %v1879 = vsel %vm1847, %v1732, %v1878
    %v1880 = vsel %vm1849, %v1736, %v1879
    %v1881 = vsel %vm1851, %v1740, %v1880
    %v1882 = vsel %vm1853, %v1744, %v1881
    %v1883 = vsel %vm1841, %v1752, %v1748
    %v1884 = vsel %vm1843, %v1756, %v1883
    %v1885 = vsel %vm1845, %v1760, %v1884
    %v1886 = vsel %vm1847, %v1764, %v1885
    %v1887 = vsel %vm1849, %v1768, %v1886
    %v1888 = vsel %vm1851, %v1772, %v1887
    %v1889 = vsel %vm1853, %v1776, %v1888
    %v1890 = vsel %vm1841, %v1784, %v1780
    %v1891 = vsel %vm1843, %v1788, %v1890
    %v1892 = vsel %vm1845, %v1792, %v1891
    %v1893 = vsel %vm1847, %v1796, %v1892
    %v1894 = vsel %vm1849, %v1800, %v1893
    %v1895 = vsel %vm1851, %v1804, %v1894
    %v1896 = vsel %vm1853, %v1808, %v1895
    %v1897 = vsel %vm1841, %v1816, %v1812
    %v1898 = vsel %vm1843, %v1820, %v1897
    %v1899 = vsel %vm1845, %v1824, %v1898
    %v1900 = vsel %vm1847, %v1828, %v1899
    %v1901 = vsel %vm1849, %v1832, %v1900
    %v1902 = vsel %vm1851, %v1836, %v1901
    %v1903 = vsel %vm1853, %v1840, %v1902
    %v1912 = vcombine.low %v1854, %v1868
    %v1913 = vcombine.high %v1854, %v1868
    %v1915 = vunpack.c.l.s4 1983009808
    %v1916 = vunpack.c.0.s8 %v1915
    %v1917 = vlaneseq
    %v1918 = vshrl.u32 %v1917, 7
    %v1919 = vsub.s32 %v1916, %v1918
    %v1920 = vrot.slane %v1912, %v1919
    %v1922 = vunpack.c.l.s4 1983009808
    %v1923 = vunpack.c.0.s8 %v1922
    %v1924 = vlaneseq
    %v1925 = vshrl.u32 %v1924, 7
    %v1926 = vsub.s32 %v1923, %v1925
    %v1927 = vrot.slane %v1913, %v1926
    %v1928 = vcombine.low %v1861, %v1875
    %v1929 = vcombine.high %v1861, %v1875
    %v1931 = vunpack.c.l.s4 1983009808
    %v1932 = vunpack.c.0.s8 %v1931
    %v1933 = vlaneseq
    %v1934 = vshrl.u32 %v1933, 7
    %v1935 = vsub.s32 %v1932, %v1934
    %v1936 = vrot.slane %v1928, %v1935
    %v1938 = vunpack.c.l.s4 1983009808
    %v1939 = vunpack.c.0.s8 %v1938
    %v1940 = vlaneseq
    %v1941 = vshrl.u32 %v1940, 7
    %v1942 = vsub.s32 %v1939, %v1941
    %v1943 = vrot.slane %v1929, %v1942
    %v1944 = vcombine.low %v1882, %v1896
    %v1945 = vcombine.high %v1882, %v1896
    %v1947 = vunpack.c.l.s4 1983009808
    %v1948 = vunpack.c.0.s8 %v1947
    %v1949 = vlaneseq
    %v1950 = vshrl.u32 %v1949, 7
    %v1951 = vsub.s32 %v1948, %v1950
    %v1952 = vrot.slane %v1944, %v1951
    %v1954 = vunpack.c.l.s4 1983009808
    %v1955 = vunpack.c.0.s8 %v1954
    %v1956 = vlaneseq
    %v1957 = vshrl.u32 %v1956, 7
    %v1958 = vsub.s32 %v1955, %v1957
    %v1959 = vrot.slane %v1945, %v1958
    %v1960 = vcombine.low %v1889, %v1903
    %v1961 = vcombine.high %v1889, %v1903
    %v1963 = vunpack.c.l.s4 1983009808
    %v1964 = vunpack.c.0.s8 %v1963
    %v1965 = vlaneseq
    %v1966 = vshrl.u32 %v1965, 7
    %v1967 = vsub.s32 %v1964, %v1966
    %v1968 = vrot.slane %v1960, %v1967
    %v1970 = vunpack.c.l.s4 1983009808
    %v1971 = vunpack.c.0.s8 %v1970
    %v1972 = vlaneseq
    %v1973 = vshrl.u32 %v1972, 7
    %v1974 = vsub.s32 %v1971, %v1973
    %v1975 = vrot.slane %v1961, %v1974
    %v1976 = vcombine.low %v1920, %v1936
    %v1977 = vcombine.high %v1920, %v1936
    %v1979 = vunpack.c.l.s4 1934713408
    %v1980 = vunpack.c.0.s8 %v1979
    %v1981 = vlaneseq
    %v1982 = vshrl.u32 %v1981, 7
    %v1983 = vsub.s32 %v1980, %v1982
    %v1984 = vrot.slane %v1976, %v1983
    %v1986 = vunpack.c.l.s4 1934713408
    %v1987 = vunpack.c.0.s8 %v1986
    %v1988 = vlaneseq
    %v1989 = vshrl.u32 %v1988, 7
    %v1990 = vsub.s32 %v1987, %v1989
    %v1991 = vrot.slane %v1977, %v1990
    %v1992 = vcombine.low %v1927, %v1943
    %v1993 = vcombine.high %v1927, %v1943
    %v1995 = vunpack.c.l.s4 1934713408
    %v1996 = vunpack.c.0.s8 %v1995
    %v1997 = vlaneseq
    %v1998 = vshrl.u32 %v1997, 7
    %v1999 = vsub.s32 %v1996, %v1998
    %v2000 = vrot.slane %v1992, %v1999
    %v2002 = vunpack.c.l.s4 1934713408
    %v2003 = vunpack.c.0.s8 %v2002
    %v2004 = vlaneseq
    %v2005 = vshrl.u32 %v2004, 7
    %v2006 = vsub.s32 %v2003, %v2005
    %v2007 = vrot.slane %v1993, %v2006
    %v2008 = vcombine.low %v1952, %v1968
    %v2009 = vcombine.high %v1952, %v1968
    %v2011 = vunpack.c.l.s4 1934713408
    %v2012 = vunpack.c.0.s8 %v2011
    %v2013 = vlaneseq
    %v2014 = vshrl.u32 %v2013, 7
    %v2015 = vsub.s32 %v2012, %v2014
    %v2016 = vrot.slane %v2008, %v2015
    %v2018 = vunpack.c.l.s4 1934713408
    %v2019 = vunpack.c.0.s8 %v2018
    %v2020 = vlaneseq
    %v2021 = vshrl.u32 %v2020, 7
    %v2022 = vsub.s32 %v2019, %v2021
    %v2023 = vrot.slane %v2009, %v2022
    %v2024 = vcombine.low %v1959, %v1975
    %v2025 = vcombine.high %v1959, %v1975
    %v2027 = vunpack.c.l.s4 1934713408
    %v2028 = vunpack.c.0.s8 %v2027
    %v2029 = vlaneseq
    %v2030 = vshrl.u32 %v2029, 7
    %v2031 = vsub.s32 %v2028, %v2030
    %v2032 = vrot.slane %v2024, %v2031
    %v2034 = vunpack.c.l.s4 1934713408
    %v2035 = vunpack.c.0.s8 %v2034
    %v2036 = vlaneseq
    %v2037 = vshrl.u32 %v2036, 7
    %v2038 = vsub.s32 %v2035, %v2037
    %v2039 = vrot.slane %v2025, %v2038
    %v2040 = vcombine.low %v1984, %v2016
    %v2041 = vcombine.high %v1984, %v2016
    %v2042 = vcombine.low %v1991, %v2023
    %v2043 = vcombine.high %v1991, %v2023
    %v2044 = vcombine.low %v2000, %v2032
    %v2045 = vcombine.high %v2000, %v2032
    %v2046 = vcombine.low %v2007, %v2039
    %v2047 = vcombine.high %v2007, %v2039
    %2049 = vrot.lane.b32.xlu0 %v2041, 8
    %v2050 = vpop.permute.xlu0 %2049
    %2053 = vrot.lane.b32.xlu0 %v2042, 16
    %v2054 = vpop.permute.xlu0 %2053
    %2057 = vrot.lane.b32.xlu0 %v2043, 24
    %v2058 = vpop.permute.xlu0 %2057
    %2061 = vrot.lane.b32.xlu0 %v2044, 32
    %v2062 = vpop.permute.xlu0 %2061
    %2065 = vrot.lane.b32.xlu0 %v2045, 40
    %v2066 = vpop.permute.xlu0 %2065
    %2069 = vrot.lane.b32.xlu0 %v2046, 48
    %v2070 = vpop.permute.xlu0 %2069
    %2073 = vrot.lane.b32.xlu0 %v2047, 56
    %v2074 = vpop.permute.xlu0 %2073
    %vm2076 = vcmask 64512
    %v2077 = vsel %vm2076, %v2040, %v2050
    %vm2078 = vcmask 130048
    %v2079 = vsel %vm2078, %v2077, %v2054
    %vm2080 = vcmask 195584
    %v2081 = vsel %vm2080, %v2079, %v2058
    %vm2082 = vcmask 261120
    %v2083 = vsel %vm2082, %v2081, %v2062
    %vm2084 = vcmask 326656
    %v2085 = vsel %vm2084, %v2083, %v2066
    %vm2086 = vcmask 392192
    %v2087 = vsel %vm2086, %v2085, %v2070
    %vm2088 = vcmask 457728
    %v2089 = vsel %vm2088, %v2087, %v2074
    %vm2090 = vcmask 523264
    %2091 = vst.msk [vmem:[#allocation5] sm:$0xff] %vm2090, %v2089
    // Predicated region
    $region10: #{tpu_custom_call.1} parent=1 // pred_check
      _
    $region11: #{tpu_custom_call.1} parent=1 // pred_check_branch
      %2093 = sbr.rel (0) target = $region13
    $region12: #{tpu_custom_call.1} parent=1 // pred_region
      %s2095 = ssub.s32 128, 128
      %2096 = vsyncadd [#allocation4], %s2095
      %s2098 = sshll.u32 [#allocation5], 4
      %s2099 = int_to_ptr.vmem [resolvable:$true] %s2098
      %2101 = dma.vmem_to_hbm [thread:$0]  %s2099, 128, %s1, [#allocation4]
    $region13: #{tpu_custom_call.1} parent=1 // pred_fallthru
      _
    // Predicated region
    $region14: #{tpu_custom_call.1} parent=1 // pred_check
      _
    $region15: #{tpu_custom_call.1} parent=1 // pred_check_branch
      %2103 = sbr.rel (0) target = $region17
    $region16: #{tpu_custom_call.1} parent=1 // pred_region
      %2104 = dma.done [#allocation4], 128
    $region17: #{tpu_custom_call.1} parent=1 // pred_fallthru
      _
    %2105 = vsyncpa [#allocation3], 1
    %2106 = vsyncpa [#allocation4], 1

// kernel: tpu_custom_call.1
$region0: #{tpu_custom_call.1}
  #allocation0 [shape = 'u32[]', space=smem, size = 0x4, offset = 0x4, fixed_abs, tag = 'smem constant byte address 0x4 - core index']
  #allocation1 [shape = 'u32[144,128]{1,0:T(1,128)}', space=vmem, size = 0x12000, scoped, tag = 'internal scratch']
  %s0 = inlined_call_operand.hbm [shape: f32[8,16,16], index: 0, kind: input, shape index: {}]
  %s1 = inlined_call_operand.hbm [shape: f32[8,8,8], index: 1, kind: output, shape index: {}]
  %s2 = sld [smem:[#allocation0]]
  $region18: #{tpu_custom_call.1} parent=0
    _
  %s4 = ssub.s32 1, %s2
  %s5 = scalar_select 0, %s4, %s2
  $region1: #{tpu_custom_call.1} parent=0
    #allocation2 [shape = 'u8[65536]{0}', space=vmem, size = 0x10000, scoped, tag = 'input window, operand 0, single buffered']
    #allocation3 [shape = 's32[1]{0}', space=sflag, size = 0x4, scoped, tag = 'scoped memory for tpu_custom_call.1']
    #allocation4 [shape = 's32[1]{0}', space=sflag, size = 0x4, scoped, tag = 'scoped memory for tpu_custom_call.1']
    #allocation5 [shape = 'u8[32768]{0}', space=vmem, size = 0x8000, scoped, tag = 'output window, operand 0, single buffered']
    %6 = vsyncpa [#allocation3], 0
    %7 = vsyncpa [#allocation4], 0
    // Predicated region
    $region2: #{tpu_custom_call.1} parent=1 // pred_check
      _
    $region3: #{tpu_custom_call.1} parent=1 // pred_check_branch
      %9 = sbr.rel (0) target = $region5
    $region4: #{tpu_custom_call.1} parent=1 // pred_region
      %s11 = ssub.s32 2048, 2048
      %12 = vsyncadd [#allocation3], %s11
      %s13 = sshll.u32 [#allocation2], 4
      %s14 = int_to_ptr.vmem [resolvable:$true] %s13
      %19 = dma.hbm_to_vmem [thread:$0]  %s0, 2048, %s14, [#allocation3], 128, 128, 8
    $region5: #{tpu_custom_call.1} parent=1 // pred_fallthru
      _
    // Predicated region
    $region6: #{tpu_custom_call.1} parent=1 // pred_check
      _
    $region7: #{tpu_custom_call.1} parent=1 // pred_check_branch
      %21 = sbr.rel (0) target = $region9
    $region8: #{tpu_custom_call.1} parent=1 // pred_region
      %22 = dma.done [#allocation3], 2048
    $region9: #{tpu_custom_call.1} parent=1 // pred_fallthru
      _
    %v23 = vld [vmem:[#allocation2] ss:$2 sm:$0xff]
    %s24 = scalar_lea.vmem [#allocation2], 16
    %v25 = vld [vmem:[%s24] ss:$2 sm:$0xff]
    %s26 = scalar_lea.vmem [#allocation2], 32
    %v27 = vld [vmem:[%s26] ss:$2 sm:$0xff]
    %s28 = scalar_lea.vmem [#allocation2], 48
    %v29 = vld [vmem:[%s28] ss:$2 sm:$0xff]
    %s30 = scalar_lea.vmem [#allocation2], 64
    %v31 = vld [vmem:[%s30] ss:$2 sm:$0xff]
    %s32 = scalar_lea.vmem [#allocation2], 80
    %v33 = vld [vmem:[%s32] ss:$2 sm:$0xff]
    %s34 = scalar_lea.vmem [#allocation2], 96
    %v35 = vld [vmem:[%s34] ss:$2 sm:$0xff]
    %s36 = scalar_lea.vmem [#allocation2], 112
    %v37 = vld [vmem:[%s36] ss:$2 sm:$0xff]
    %s38 = scalar_lea.vmem [#allocation2], 1
    %v39 = vld [vmem:[%s38] ss:$2 sm:$0xff]
    %s40 = scalar_lea.vmem [#allocation2], 17
    %v41 = vld [vmem:[%s40] ss:$2 sm:$0xff]
    %s42 = scalar_lea.vmem [#allocation2], 33
    %v43 = vld [vmem:[%s42] ss:$2 sm:$0xff]
    %s44 = scalar_lea.vmem [#allocation2], 49
    %v45 = vld [vmem:[%s44] ss:$2 sm:$0xff]
    %s46 = scalar_lea.vmem [#allocation2], 65
    %v47 = vld [vmem:[%s46] ss:$2 sm:$0xff]
    %s48 = scalar_lea.vmem [#allocation2], 81
    %v49 = vld [vmem:[%s48] ss:$2 sm:$0xff]
    %s50 = scalar_lea.vmem [#allocation2], 97
    %v51 = vld [vmem:[%s50] ss:$2 sm:$0xff]
    %s52 = scalar_lea.vmem [#allocation2], 113
    %v53 = vld [vmem:[%s52] ss:$2 sm:$0xff]
    %v54 = vmax.f32 %v23, %v39
    %v55 = vmax.f32 %v25, %v41
    %v56 = vmax.f32 %v27, %v43
    %v57 = vmax.f32 %v29, %v45
    %v58 = vmax.f32 %v31, %v47
    %v59 = vmax.f32 %v33, %v49
    %v60 = vmax.f32 %v35, %v51
    %v61 = vmax.f32 %v37, %v53
    %70 = vrot.lane.b32.xlu0 %v54, 126
    %v71 = vpop.permute.xlu0 %70
    %72 = vrot.lane.b32.xlu0 %v55, 126
    %v73 = vpop.permute.xlu0 %72
    %74 = vrot.lane.b32.xlu0 %v56, 126
    %v75 = vpop.permute.xlu0 %74
    %76 = vrot.lane.b32.xlu0 %v57, 126
    %v77 = vpop.permute.xlu0 %76
    %78 = vrot.lane.b32.xlu0 %v58, 126
    %v79 = vpop.permute.xlu0 %78
    %80 = vrot.lane.b32.xlu0 %v59, 126
    %v81 = vpop.permute.xlu0 %80
    %82 = vrot.lane.b32.xlu0 %v60, 126
    %v83 = vpop.permute.xlu0 %82
    %84 = vrot.lane.b32.xlu0 %v61, 126
    %v85 = vpop.permute.xlu0 %84
    %94 = vrot.lane.b32.xlu0 %v54, 124
    %v95 = vpop.permute.xlu0 %94
    %96 = vrot.lane.b32.xlu0 %v55, 124
    %v97 = vpop.permute.xlu0 %96
    %98 = vrot.lane.b32.xlu0 %v56, 124
    %v99 = vpop.permute.xlu0 %98
    %100 = vrot.lane.b32.xlu0 %v57, 124
    %v101 = vpop.permute.xlu0 %100
    %102 = vrot.lane.b32.xlu0 %v58, 124
    %v103 = vpop.permute.xlu0 %102
    %104 = vrot.lane.b32.xlu0 %v59, 124
    %v105 = vpop.permute.xlu0 %104
    %106 = vrot.lane.b32.xlu0 %v60, 124
    %v107 = vpop.permute.xlu0 %106
    %108 = vrot.lane.b32.xlu0 %v61, 124
    %v109 = vpop.permute.xlu0 %108
    %118 = vrot.lane.b32.xlu0 %v54, 122
    %v119 = vpop.permute.xlu0 %118
    %120 = vrot.lane.b32.xlu0 %v55, 122
    %v121 = vpop.permute.xlu0 %120
    %122 = vrot.lane.b32.xlu0 %v56, 122
    %v123 = vpop.permute.xlu0 %122
    %124 = vrot.lane.b32.xlu0 %v57, 122
    %v125 = vpop.permute.xlu0 %124
    %126 = vrot.lane.b32.xlu0 %v58, 122
    %v127 = vpop.permute.xlu0 %126
    %128 = vrot.lane.b32.xlu0 %v59, 122
    %v129 = vpop.permute.xlu0 %128
    %130 = vrot.lane.b32.xlu0 %v60, 122
    %v131 = vpop.permute.xlu0 %130
    %132 = vrot.lane.b32.xlu0 %v61, 122
    %v133 = vpop.permute.xlu0 %132
    %142 = vrot.lane.b32.xlu0 %v54, 120
    %v143 = vpop.permute.xlu0 %142
    %144 = vrot.lane.b32.xlu0 %v55, 120
    %v145 = vpop.permute.xlu0 %144
    %146 = vrot.lane.b32.xlu0 %v56, 120
    %v147 = vpop.permute.xlu0 %146
    %148 = vrot.lane.b32.xlu0 %v57, 120
    %v149 = vpop.permute.xlu0 %148
    %150 = vrot.lane.b32.xlu0 %v58, 120
    %v151 = vpop.permute.xlu0 %150
    %152 = vrot.lane.b32.xlu0 %v59, 120
    %v153 = vpop.permute.xlu0 %152
    %154 = vrot.lane.b32.xlu0 %v60, 120
    %v155 = vpop.permute.xlu0 %154
    %156 = vrot.lane.b32.xlu0 %v61, 120
    %v157 = vpop.permute.xlu0 %156
    %166 = vrot.lane.b32.xlu0 %v54, 118
    %v167 = vpop.permute.xlu0 %166
    %168 = vrot.lane.b32.xlu0 %v55, 118
    %v169 = vpop.permute.xlu0 %168
    %170 = vrot.lane.b32.xlu0 %v56, 118
    %v171 = vpop.permute.xlu0 %170
    %172 = vrot.lane.b32.xlu0 %v57, 118
    %v173 = vpop.permute.xlu0 %172
    %174 = vrot.lane.b32.xlu0 %v58, 118
    %v175 = vpop.permute.xlu0 %174
    %176 = vrot.lane.b32.xlu0 %v59, 118
    %v177 = vpop.permute.xlu0 %176
    %178 = vrot.lane.b32.xlu0 %v60, 118
    %v179 = vpop.permute.xlu0 %178
    %180 = vrot.lane.b32.xlu0 %v61, 118
    %v181 = vpop.permute.xlu0 %180
    %190 = vrot.lane.b32.xlu0 %v54, 116
    %v191 = vpop.permute.xlu0 %190
    %192 = vrot.lane.b32.xlu0 %v55, 116
    %v193 = vpop.permute.xlu0 %192
    %194 = vrot.lane.b32.xlu0 %v56, 116
    %v195 = vpop.permute.xlu0 %194
    %196 = vrot.lane.b32.xlu0 %v57, 116
    %v197 = vpop.permute.xlu0 %196
    %198 = vrot.lane.b32.xlu0 %v58, 116
    %v199 = vpop.permute.xlu0 %198
    %200 = vrot.lane.b32.xlu0 %v59, 116
    %v201 = vpop.permute.xlu0 %200
    %202 = vrot.lane.b32.xlu0 %v60, 116
    %v203 = vpop.permute.xlu0 %202
    %204 = vrot.lane.b32.xlu0 %v61, 116
    %v205 = vpop.permute.xlu0 %204
    %214 = vrot.lane.b32.xlu0 %v54, 114
    %v215 = vpop.permute.xlu0 %214
    %216 = vrot.lane.b32.xlu0 %v55, 114
    %v217 = vpop.permute.xlu0 %216
    %218 = vrot.lane.b32.xlu0 %v56, 114
    %v219 = vpop.permute.xlu0 %218
    %220 = vrot.lane.b32.xlu0 %v57, 114
    %v221 = vpop.permute.xlu0 %220
    %222 = vrot.lane.b32.xlu0 %v58, 114
    %v223 = vpop.permute.xlu0 %222
    %224 = vrot.lane.b32.xlu0 %v59, 114
    %v225 = vpop.permute.xlu0 %224
    %226 = vrot.lane.b32.xlu0 %v60, 114
    %v227 = vpop.permute.xlu0 %226
    %228 = vrot.lane.b32.xlu0 %v61, 114
    %v229 = vpop.permute.xlu0 %228
    %v238 = vcombine.low %v54, %v95
    %v239 = vcombine.high %v54, %v95
    %v241 = vunpack.c.l.s4 1983009808
    %v242 = vunpack.c.0.s8 %v241
    %v243 = vlaneseq
    %v244 = vshrl.u32 %v243, 7
    %v245 = vsub.s32 %v242, %v244
    %v246 = vrot.slane %v238, %v245
    %v248 = vunpack.c.l.s4 1983009808
    %v249 = vunpack.c.0.s8 %v248
    %v250 = vlaneseq
    %v251 = vshrl.u32 %v250, 7
    %v252 = vsub.s32 %v249, %v251
    %v253 = vrot.slane %v239, %v252
    %v254 = vcombine.low %v71, %v119
    %v255 = vcombine.high %v71, %v119
    %v257 = vunpack.c.l.s4 1983009808
    %v258 = vunpack.c.0.s8 %v257
    %v259 = vlaneseq
    %v260 = vshrl.u32 %v259, 7
    %v261 = vsub.s32 %v258, %v260
    %v262 = vrot.slane %v254, %v261
    %v264 = vunpack.c.l.s4 1983009808
    %v265 = vunpack.c.0.s8 %v264
    %v266 = vlaneseq
    %v267 = vshrl.u32 %v266, 7
    %v268 = vsub.s32 %v265, %v267
    %v269 = vrot.slane %v255, %v268
    %v270 = vcombine.low %v143, %v191
    %v271 = vcombine.high %v143, %v191
    %v273 = vunpack.c.l.s4 1983009808
    %v274 = vunpack.c.0.s8 %v273
    %v275 = vlaneseq
    %v276 = vshrl.u32 %v275, 7
    %v277 = vsub.s32 %v274, %v276
    %v278 = vrot.slane %v270, %v277
    %v280 = vunpack.c.l.s4 1983009808
    %v281 = vunpack.c.0.s8 %v280
    %v282 = vlaneseq
    %v283 = vshrl.u32 %v282, 7
    %v284 = vsub.s32 %v281, %v283
    %v285 = vrot.slane %v271, %v284
    %v286 = vcombine.low %v167, %v215
    %v287 = vcombine.high %v167, %v215
    %v289 = vunpack.c.l.s4 1983009808
    %v290 = vunpack.c.0.s8 %v289
    %v291 = vlaneseq
    %v292 = vshrl.u32 %v291, 7
    %v293 = vsub.s32 %v290, %v292
    %v294 = vrot.slane %v286, %v293
    %v296 = vunpack.c.l.s4 1983009808
    %v297 = vunpack.c.0.s8 %v296
    %v298 = vlaneseq
    %v299 = vshrl.u32 %v298, 7
    %v300 = vsub.s32 %v297, %v299
    %v301 = vrot.slane %v287, %v300
    %v302 = vcombine.low %v246, %v262
    %v303 = vcombine.high %v246, %v262
    %v305 = vunpack.c.l.s4 1934713408
    %v306 = vunpack.c.0.s8 %v305
    %v307 = vlaneseq
    %v308 = vshrl.u32 %v307, 7
    %v309 = vsub.s32 %v306, %v308
    %v310 = vrot.slane %v302, %v309
    %v312 = vunpack.c.l.s4 1934713408
    %v313 = vunpack.c.0.s8 %v312
    %v314 = vlaneseq
    %v315 = vshrl.u32 %v314, 7
    %v316 = vsub.s32 %v313, %v315
    %v317 = vrot.slane %v303, %v316
    %v318 = vcombine.low %v253, %v269
    %v319 = vcombine.high %v253, %v269
    %v321 = vunpack.c.l.s4 1934713408
    %v322 = vunpack.c.0.s8 %v321
    %v323 = vlaneseq
    %v324 = vshrl.u32 %v323, 7
    %v325 = vsub.s32 %v322, %v324
    %v326 = vrot.slane %v318, %v325
    %v328 = vunpack.c.l.s4 1934713408
    %v329 = vunpack.c.0.s8 %v328
    %v330 = vlaneseq
    %v331 = vshrl.u32 %v330, 7
    %v332 = vsub.s32 %v329, %v331
    %v333 = vrot.slane %v319, %v332
    %v334 = vcombine.low %v278, %v294
    %v335 = vcombine.high %v278, %v294
    %v337 = vunpack.c.l.s4 1934713408
    %v338 = vunpack.c.0.s8 %v337
    %v339 = vlaneseq
    %v340 = vshrl.u32 %v339, 7
    %v341 = vsub.s32 %v338, %v340
    %v342 = vrot.slane %v334, %v341
    %v344 = vunpack.c.l.s4 1934713408
    %v345 = vunpack.c.0.s8 %v344
    %v346 = vlaneseq
    %v347 = vshrl.u32 %v346, 7
    %v348 = vsub.s32 %v345, %v347
    %v349 = vrot.slane %v335, %v348
    %v350 = vcombine.low %v285, %v301
    %v351 = vcombine.high %v285, %v301
    %v353 = vunpack.c.l.s4 1934713408
    %v354 = vunpack.c.0.s8 %v353
    %v355 = vlaneseq
    %v356 = vshrl.u32 %v355, 7
    %v357 = vsub.s32 %v354, %v356
    %v358 = vrot.slane %v350, %v357
    %v360 = vunpack.c.l.s4 1934713408
    %v361 = vunpack.c.0.s8 %v360
    %v362 = vlaneseq
    %v363 = vshrl.u32 %v362, 7
    %v364 = vsub.s32 %v361, %v363
    %v365 = vrot.slane %v351, %v364
    %v366 = vcombine.low %v310, %v342
    %v367 = vcombine.high %v310, %v342
    %v368 = vcombine.low %v317, %v349
    %v369 = vcombine.high %v317, %v349
    %v370 = vcombine.low %v326, %v358
    %v371 = vcombine.high %v326, %v358
    %v372 = vcombine.low %v333, %v365
    %v373 = vcombine.high %v333, %v365
    %v374 = vcombine.low %v55, %v97
    %v375 = vcombine.high %v55, %v97
    %v377 = vunpack.c.l.s4 1983009808
    %v378 = vunpack.c.0.s8 %v377
    %v379 = vlaneseq
    %v380 = vshrl.u32 %v379, 7
    %v381 = vsub.s32 %v378, %v380
    %v382 = vrot.slane %v374, %v381
    %v384 = vunpack.c.l.s4 1983009808
    %v385 = vunpack.c.0.s8 %v384
    %v386 = vlaneseq
    %v387 = vshrl.u32 %v386, 7
    %v388 = vsub.s32 %v385, %v387
    %v389 = vrot.slane %v375, %v388
    %v390 = vcombine.low %v73, %v121
    %v391 = vcombine.high %v73, %v121
    %v393 = vunpack.c.l.s4 1983009808
    %v394 = vunpack.c.0.s8 %v393
    %v395 = vlaneseq
    %v396 = vshrl.u32 %v395, 7
    %v397 = vsub.s32 %v394, %v396
    %v398 = vrot.slane %v390, %v397
    %v400 = vunpack.c.l.s4 1983009808
    %v401 = vunpack.c.0.s8 %v400
    %v402 = vlaneseq
    %v403 = vshrl.u32 %v402, 7
    %v404 = vsub.s32 %v401, %v403
    %v405 = vrot.slane %v391, %v404
    %v406 = vcombine.low %v145, %v193
    %v407 = vcombine.high %v145, %v193
    %v409 = vunpack.c.l.s4 1983009808
    %v410 = vunpack.c.0.s8 %v409
    %v411 = vlaneseq
    %v412 = vshrl.u32 %v411, 7
    %v413 = vsub.s32 %v410, %v412
    %v414 = vrot.slane %v406, %v413
    %v416 = vunpack.c.l.s4 1983009808
    %v417 = vunpack.c.0.s8 %v416
    %v418 = vlaneseq
    %v419 = vshrl.u32 %v418, 7
    %v420 = vsub.s32 %v417, %v419
    %v421 = vrot.slane %v407, %v420
    %v422 = vcombine.low %v169, %v217
    %v423 = vcombine.high %v169, %v217
    %v425 = vunpack.c.l.s4 1983009808
    %v426 = vunpack.c.0.s8 %v425
    %v427 = vlaneseq
    %v428 = vshrl.u32 %v427, 7
    %v429 = vsub.s32 %v426, %v428
    %v430 = vrot.slane %v422, %v429
    %v432 = vunpack.c.l.s4 1983009808
    %v433 = vunpack.c.0.s8 %v432
    %v434 = vlaneseq
    %v435 = vshrl.u32 %v434, 7
    %v436 = vsub.s32 %v433, %v435
    %v437 = vrot.slane %v423, %v436
    %v438 = vcombine.low %v382, %v398
    %v439 = vcombine.high %v382, %v398
    %v441 = vunpack.c.l.s4 1934713408
    %v442 = vunpack.c.0.s8 %v441
    %v443 = vlaneseq
    %v444 = vshrl.u32 %v443, 7
    %v445 = vsub.s32 %v442, %v444
    %v446 = vrot.slane %v438, %v445
    %v448 = vunpack.c.l.s4 1934713408
    %v449 = vunpack.c.0.s8 %v448
    %v450 = vlaneseq
    %v451 = vshrl.u32 %v450, 7
    %v452 = vsub.s32 %v449, %v451
    %v453 = vrot.slane %v439, %v452
    %v454 = vcombine.low %v389, %v405
    %v455 = vcombine.high %v389, %v405
    %v457 = vunpack.c.l.s4 1934713408
    %v458 = vunpack.c.0.s8 %v457
    %v459 = vlaneseq
    %v460 = vshrl.u32 %v459, 7
    %v461 = vsub.s32 %v458, %v460
    %v462 = vrot.slane %v454, %v461
    %v464 = vunpack.c.l.s4 1934713408
    %v465 = vunpack.c.0.s8 %v464
    %v466 = vlaneseq
    %v467 = vshrl.u32 %v466, 7
    %v468 = vsub.s32 %v465, %v467
    %v469 = vrot.slane %v455, %v468
    %v470 = vcombine.low %v414, %v430
    %v471 = vcombine.high %v414, %v430
    %v473 = vunpack.c.l.s4 1934713408
    %v474 = vunpack.c.0.s8 %v473
    %v475 = vlaneseq
    %v476 = vshrl.u32 %v475, 7
    %v477 = vsub.s32 %v474, %v476
    %v478 = vrot.slane %v470, %v477
    %v480 = vunpack.c.l.s4 1934713408
    %v481 = vunpack.c.0.s8 %v480
    %v482 = vlaneseq
    %v483 = vshrl.u32 %v482, 7
    %v484 = vsub.s32 %v481, %v483
    %v485 = vrot.slane %v471, %v484
    %v486 = vcombine.low %v421, %v437
    %v487 = vcombine.high %v421, %v437
    %v489 = vunpack.c.l.s4 1934713408
    %v490 = vunpack.c.0.s8 %v489
    %v491 = vlaneseq
    %v492 = vshrl.u32 %v491, 7
    %v493 = vsub.s32 %v490, %v492
    %v494 = vrot.slane %v486, %v493
    %v496 = vunpack.c.l.s4 1934713408
    %v497 = vunpack.c.0.s8 %v496
    %v498 = vlaneseq
    %v499 = vshrl.u32 %v498, 7
    %v500 = vsub.s32 %v497, %v499
    %v501 = vrot.slane %v487, %v500
    %v502 = vcombine.low %v446, %v478
    %v503 = vcombine.high %v446, %v478
    %v504 = vcombine.low %v453, %v485
    %v505 = vcombine.high %v453, %v485
    %v506 = vcombine.low %v462, %v494
    %v507 = vcombine.high %v462, %v494
    %v508 = vcombine.low %v469, %v501
    %v509 = vcombine.high %v469, %v501
    %v510 = vcombine.low %v56, %v99
    %v511 = vcombine.high %v56, %v99
    %v513 = vunpack.c.l.s4 1983009808
    %v514 = vunpack.c.0.s8 %v513
    %v515 = vlaneseq
    %v516 = vshrl.u32 %v515, 7
    %v517 = vsub.s32 %v514, %v516
    %v518 = vrot.slane %v510, %v517
    %v520 = vunpack.c.l.s4 1983009808
    %v521 = vunpack.c.0.s8 %v520
    %v522 = vlaneseq
    %v523 = vshrl.u32 %v522, 7
    %v524 = vsub.s32 %v521, %v523
    %v525 = vrot.slane %v511, %v524
    %v526 = vcombine.low %v75, %v123
    %v527 = vcombine.high %v75, %v123
    %v529 = vunpack.c.l.s4 1983009808
    %v530 = vunpack.c.0.s8 %v529
    %v531 = vlaneseq
    %v532 = vshrl.u32 %v531, 7
    %v533 = vsub.s32 %v530, %v532
    %v534 = vrot.slane %v526, %v533
    %v536 = vunpack.c.l.s4 1983009808
    %v537 = vunpack.c.0.s8 %v536
    %v538 = vlaneseq
    %v539 = vshrl.u32 %v538, 7
    %v540 = vsub.s32 %v537, %v539
    %v541 = vrot.slane %v527, %v540
    %v542 = vcombine.low %v147, %v195
    %v543 = vcombine.high %v147, %v195
    %v545 = vunpack.c.l.s4 1983009808
    %v546 = vunpack.c.0.s8 %v545
    %v547 = vlaneseq
    %v548 = vshrl.u32 %v547, 7
    %v549 = vsub.s32 %v546, %v548
    %v550 = vrot.slane %v542, %v549
    %v552 = vunpack.c.l.s4 1983009808
    %v553 = vunpack.c.0.s8 %v552
    %v554 = vlaneseq
    %v555 = vshrl.u32 %v554, 7
    %v556 = vsub.s32 %v553, %v555
    %v557 = vrot.slane %v543, %v556
    %v558 = vcombine.low %v171, %v219
    %v559 = vcombine.high %v171, %v219
    %v561 = vunpack.c.l.s4 1983009808
    %v562 = vunpack.c.0.s8 %v561
    %v563 = vlaneseq
    %v564 = vshrl.u32 %v563, 7
    %v565 = vsub.s32 %v562, %v564
    %v566 = vrot.slane %v558, %v565
    %v568 = vunpack.c.l.s4 1983009808
    %v569 = vunpack.c.0.s8 %v568
    %v570 = vlaneseq
    %v571 = vshrl.u32 %v570, 7
    %v572 = vsub.s32 %v569, %v571
    %v573 = vrot.slane %v559, %v572
    %v574 = vcombine.low %v518, %v534
    %v575 = vcombine.high %v518, %v534
    %v577 = vunpack.c.l.s4 1934713408
    %v578 = vunpack.c.0.s8 %v577
    %v579 = vlaneseq
    %v580 = vshrl.u32 %v579, 7
    %v581 = vsub.s32 %v578, %v580
    %v582 = vrot.slane %v574, %v581
    %v584 = vunpack.c.l.s4 1934713408
    %v585 = vunpack.c.0.s8 %v584
    %v586 = vlaneseq
    %v587 = vshrl.u32 %v586, 7
    %v588 = vsub.s32 %v585, %v587
    %v589 = vrot.slane %v575, %v588
    %v590 = vcombine.low %v525, %v541
    %v591 = vcombine.high %v525, %v541
    %v593 = vunpack.c.l.s4 1934713408
    %v594 = vunpack.c.0.s8 %v593
    %v595 = vlaneseq
    %v596 = vshrl.u32 %v595, 7
    %v597 = vsub.s32 %v594, %v596
    %v598 = vrot.slane %v590, %v597
    %v600 = vunpack.c.l.s4 1934713408
    %v601 = vunpack.c.0.s8 %v600
    %v602 = vlaneseq
    %v603 = vshrl.u32 %v602, 7
    %v604 = vsub.s32 %v601, %v603
    %v605 = vrot.slane %v591, %v604
    %v606 = vcombine.low %v550, %v566
    %v607 = vcombine.high %v550, %v566
    %v609 = vunpack.c.l.s4 1934713408
    %v610 = vunpack.c.0.s8 %v609
    %v611 = vlaneseq
    %v612 = vshrl.u32 %v611, 7
    %v613 = vsub.s32 %v610, %v612
    %v614 = vrot.slane %v606, %v613
    %v616 = vunpack.c.l.s4 1934713408
    %v617 = vunpack.c.0.s8 %v616
    %v618 = vlaneseq
    %v619 = vshrl.u32 %v618, 7
    %v620 = vsub.s32 %v617, %v619
    %v621 = vrot.slane %v607, %v620
    %v622 = vcombine.low %v557, %v573
    %v623 = vcombine.high %v557, %v573
    %v625 = vunpack.c.l.s4 1934713408
    %v626 = vunpack.c.0.s8 %v625
    %v627 = vlaneseq
    %v628 = vshrl.u32 %v627, 7
    %v629 = vsub.s32 %v626, %v628
    %v630 = vrot.slane %v622, %v629
    %v632 = vunpack.c.l.s4 1934713408
    %v633 = vunpack.c.0.s8 %v632
    %v634 = vlaneseq
    %v635 = vshrl.u32 %v634, 7
    %v636 = vsub.s32 %v633, %v635
    %v637 = vrot.slane %v623, %v636
    %v638 = vcombine.low %v582, %v614
    %v639 = vcombine.high %v582, %v614
    %v640 = vcombine.low %v589, %v621
    %v641 = vcombine.high %v589, %v621
    %v642 = vcombine.low %v598, %v630
    %v643 = vcombine.high %v598, %v630
    %v644 = vcombine.low %v605, %v637
    %v645 = vcombine.high %v605, %v637
    %v646 = vcombine.low %v57, %v101
    %v647 = vcombine.high %v57, %v101
    %v649 = vunpack.c.l.s4 1983009808
    %v650 = vunpack.c.0.s8 %v649
    %v651 = vlaneseq
    %v652 = vshrl.u32 %v651, 7
    %v653 = vsub.s32 %v650, %v652
    %v654 = vrot.slane %v646, %v653
    %v656 = vunpack.c.l.s4 1983009808
    %v657 = vunpack.c.0.s8 %v656
    %v658 = vlaneseq
    %v659 = vshrl.u32 %v658, 7
    %v660 = vsub.s32 %v657, %v659
    %v661 = vrot.slane %v647, %v660
    %v662 = vcombine.low %v77, %v125
    %v663 = vcombine.high %v77, %v125
    %v665 = vunpack.c.l.s4 1983009808
    %v666 = vunpack.c.0.s8 %v665
    %v667 = vlaneseq
    %v668 = vshrl.u32 %v667, 7
    %v669 = vsub.s32 %v666, %v668
    %v670 = vrot.slane %v662, %v669
    %v672 = vunpack.c.l.s4 1983009808
    %v673 = vunpack.c.0.s8 %v672
    %v674 = vlaneseq
    %v675 = vshrl.u32 %v674, 7
    %v676 = vsub.s32 %v673, %v675
    %v677 = vrot.slane %v663, %v676
    %v678 = vcombine.low %v149, %v197
    %v679 = vcombine.high %v149, %v197
    %v681 = vunpack.c.l.s4 1983009808
    %v682 = vunpack.c.0.s8 %v681
    %v683 = vlaneseq
    %v684 = vshrl.u32 %v683, 7
    %v685 = vsub.s32 %v682, %v684
    %v686 = vrot.slane %v678, %v685
    %v688 = vunpack.c.l.s4 1983009808
    %v689 = vunpack.c.0.s8 %v688
    %v690 = vlaneseq
    %v691 = vshrl.u32 %v690, 7
    %v692 = vsub.s32 %v689, %v691
    %v693 = vrot.slane %v679, %v692
    %v694 = vcombine.low %v173, %v221
    %v695 = vcombine.high %v173, %v221
    %v697 = vunpack.c.l.s4 1983009808
    %v698 = vunpack.c.0.s8 %v697
    %v699 = vlaneseq
    %v700 = vshrl.u32 %v699, 7
    %v701 = vsub.s32 %v698, %v700
    %v702 = vrot.slane %v694, %v701
    %v704 = vunpack.c.l.s4 1983009808
    %v705 = vunpack.c.0.s8 %v704
    %v706 = vlaneseq
    %v707 = vshrl.u32 %v706, 7
    %v708 = vsub.s32 %v705, %v707
    %v709 = vrot.slane %v695, %v708
    %v710 = vcombine.low %v654, %v670
    %v711 = vcombine.high %v654, %v670
    %v713 = vunpack.c.l.s4 1934713408
    %v714 = vunpack.c.0.s8 %v713
    %v715 = vlaneseq
    %v716 = vshrl.u32 %v715, 7
    %v717 = vsub.s32 %v714, %v716
    %v718 = vrot.slane %v710, %v717
    %v720 = vunpack.c.l.s4 1934713408
    %v721 = vunpack.c.0.s8 %v720
    %v722 = vlaneseq
    %v723 = vshrl.u32 %v722, 7
    %v724 = vsub.s32 %v721, %v723
    %v725 = vrot.slane %v711, %v724
    %v726 = vcombine.low %v661, %v677
    %v727 = vcombine.high %v661, %v677
    %v729 = vunpack.c.l.s4 1934713408
    %v730 = vunpack.c.0.s8 %v729
    %v731 = vlaneseq
    %v732 = vshrl.u32 %v731, 7
    %v733 = vsub.s32 %v730, %v732
    %v734 = vrot.slane %v726, %v733
    %v736 = vunpack.c.l.s4 1934713408
    %v737 = vunpack.c.0.s8 %v736
    %v738 = vlaneseq
    %v739 = vshrl.u32 %v738, 7
    %v740 = vsub.s32 %v737, %v739
    %v741 = vrot.slane %v727, %v740
    %v742 = vcombine.low %v686, %v702
    %v743 = vcombine.high %v686, %v702
    %v745 = vunpack.c.l.s4 1934713408
    %v746 = vunpack.c.0.s8 %v745
    %v747 = vlaneseq
    %v748 = vshrl.u32 %v747, 7
    %v749 = vsub.s32 %v746, %v748
    %v750 = vrot.slane %v742, %v749
    %v752 = vunpack.c.l.s4 1934713408
    %v753 = vunpack.c.0.s8 %v752
    %v754 = vlaneseq
    %v755 = vshrl.u32 %v754, 7
    %v756 = vsub.s32 %v753, %v755
    %v757 = vrot.slane %v743, %v756
    %v758 = vcombine.low %v693, %v709
    %v759 = vcombine.high %v693, %v709
    %v761 = vunpack.c.l.s4 1934713408
    %v762 = vunpack.c.0.s8 %v761
    %v763 = vlaneseq
    %v764 = vshrl.u32 %v763, 7
    %v765 = vsub.s32 %v762, %v764
    %v766 = vrot.slane %v758, %v765
    %v768 = vunpack.c.l.s4 1934713408
    %v769 = vunpack.c.0.s8 %v768
    %v770 = vlaneseq
    %v771 = vshrl.u32 %v770, 7
    %v772 = vsub.s32 %v769, %v771
    %v773 = vrot.slane %v759, %v772
    %v774 = vcombine.low %v718, %v750
    %v775 = vcombine.high %v718, %v750
    %v776 = vcombine.low %v725, %v757
    %v777 = vcombine.high %v725, %v757
    %v778 = vcombine.low %v734, %v766
    %v779 = vcombine.high %v734, %v766
    %v780 = vcombine.low %v741, %v773
    %v781 = vcombine.high %v741, %v773
    %v782 = vcombine.low %v58, %v103
    %v783 = vcombine.high %v58, %v103
    %v785 = vunpack.c.l.s4 1983009808
    %v786 = vunpack.c.0.s8 %v785
    %v787 = vlaneseq
    %v788 = vshrl.u32 %v787, 7
    %v789 = vsub.s32 %v786, %v788
    %v790 = vrot.slane %v782, %v789
    %v792 = vunpack.c.l.s4 1983009808
    %v793 = vunpack.c.0.s8 %v792
    %v794 = vlaneseq
    %v795 = vshrl.u32 %v794, 7
    %v796 = vsub.s32 %v793, %v795
    %v797 = vrot.slane %v783, %v796
    %v798 = vcombine.low %v79, %v127
    %v799 = vcombine.high %v79, %v127
    %v801 = vunpack.c.l.s4 1983009808
    %v802 = vunpack.c.0.s8 %v801
    %v803 = vlaneseq
    %v804 = vshrl.u32 %v803, 7
    %v805 = vsub.s32 %v802, %v804
    %v806 = vrot.slane %v798, %v805
    %v808 = vunpack.c.l.s4 1983009808
    %v809 = vunpack.c.0.s8 %v808
    %v810 = vlaneseq
    %v811 = vshrl.u32 %v810, 7
    %v812 = vsub.s32 %v809, %v811
    %v813 = vrot.slane %v799, %v812
    %v814 = vcombine.low %v151, %v199
    %v815 = vcombine.high %v151, %v199
    %v817 = vunpack.c.l.s4 1983009808
    %v818 = vunpack.c.0.s8 %v817
    %v819 = vlaneseq
    %v820 = vshrl.u32 %v819, 7
    %v821 = vsub.s32 %v818, %v820
    %v822 = vrot.slane %v814, %v821
    %v824 = vunpack.c.l.s4 1983009808
    %v825 = vunpack.c.0.s8 %v824
    %v826 = vlaneseq
    %v827 = vshrl.u32 %v826, 7
    %v828 = vsub.s32 %v825, %v827
    %v829 = vrot.slane %v815, %v828
    %v830 = vcombine.low %v175, %v223
    %v831 = vcombine.high %v175, %v223
    %v833 = vunpack.c.l.s4 1983009808
    %v834 = vunpack.c.0.s8 %v833
    %v835 = vlaneseq
    %v836 = vshrl.u32 %v835, 7
    %v837 = vsub.s32 %v834, %v836
    %v838 = vrot.slane %v830, %v837
    %v840 = vunpack.c.l.s4 1983009808
    %v841 = vunpack.c.0.s8 %v840
    %v842 = vlaneseq
    %v843 = vshrl.u32 %v842, 7
    %v844 = vsub.s32 %v841, %v843
    %v845 = vrot.slane %v831, %v844
    %v846 = vcombine.low %v790, %v806
    %v847 = vcombine.high %v790, %v806
    %v849 = vunpack.c.l.s4 1934713408
    %v850 = vunpack.c.0.s8 %v849
    %v851 = vlaneseq
    %v852 = vshrl.u32 %v851, 7
    %v853 = vsub.s32 %v850, %v852
    %v854 = vrot.slane %v846, %v853
    %v856 = vunpack.c.l.s4 1934713408
    %v857 = vunpack.c.0.s8 %v856
    %v858 = vlaneseq
    %v859 = vshrl.u32 %v858, 7
    %v860 = vsub.s32 %v857, %v859
    %v861 = vrot.slane %v847, %v860
    %v862 = vcombine.low %v797, %v813
    %v863 = vcombine.high %v797, %v813
    %v865 = vunpack.c.l.s4 1934713408
    %v866 = vunpack.c.0.s8 %v865
    %v867 = vlaneseq
    %v868 = vshrl.u32 %v867, 7
    %v869 = vsub.s32 %v866, %v868
    %v870 = vrot.slane %v862, %v869
    %v872 = vunpack.c.l.s4 1934713408
    %v873 = vunpack.c.0.s8 %v872
    %v874 = vlaneseq
    %v875 = vshrl.u32 %v874, 7
    %v876 = vsub.s32 %v873, %v875
    %v877 = vrot.slane %v863, %v876
    %v878 = vcombine.low %v822, %v838
    %v879 = vcombine.high %v822, %v838
    %v881 = vunpack.c.l.s4 1934713408
    %v882 = vunpack.c.0.s8 %v881
    %v883 = vlaneseq
    %v884 = vshrl.u32 %v883, 7
    %v885 = vsub.s32 %v882, %v884
    %v886 = vrot.slane %v878, %v885
    %v888 = vunpack.c.l.s4 1934713408
    %v889 = vunpack.c.0.s8 %v888
    %v890 = vlaneseq
    %v891 = vshrl.u32 %v890, 7
    %v892 = vsub.s32 %v889, %v891
    %v893 = vrot.slane %v879, %v892
    %v894 = vcombine.low %v829, %v845
    %v895 = vcombine.high %v829, %v845
    %v897 = vunpack.c.l.s4 1934713408
    %v898 = vunpack.c.0.s8 %v897
    %v899 = vlaneseq
    %v900 = vshrl.u32 %v899, 7
    %v901 = vsub.s32 %v898, %v900
    %v902 = vrot.slane %v894, %v901
    %v904 = vunpack.c.l.s4 1934713408
    %v905 = vunpack.c.0.s8 %v904
    %v906 = vlaneseq
    %v907 = vshrl.u32 %v906, 7
    %v908 = vsub.s32 %v905, %v907
    %v909 = vrot.slane %v895, %v908
    %v910 = vcombine.low %v854, %v886
    %v911 = vcombine.high %v854, %v886
    %v912 = vcombine.low %v861, %v893
    %v913 = vcombine.high %v861, %v893
    %v914 = vcombine.low %v870, %v902
    %v915 = vcombine.high %v870, %v902
    %v916 = vcombine.low %v877, %v909
    %v917 = vcombine.high %v877, %v909
    %v918 = vcombine.low %v59, %v105
    %v919 = vcombine.high %v59, %v105
    %v921 = vunpack.c.l.s4 1983009808
    %v922 = vunpack.c.0.s8 %v921
    %v923 = vlaneseq
    %v924 = vshrl.u32 %v923, 7
    %v925 = vsub.s32 %v922, %v924
    %v926 = vrot.slane %v918, %v925
    %v928 = vunpack.c.l.s4 1983009808
    %v929 = vunpack.c.0.s8 %v928
    %v930 = vlaneseq
    %v931 = vshrl.u32 %v930, 7
    %v932 = vsub.s32 %v929, %v931
    %v933 = vrot.slane %v919, %v932
    %v934 = vcombine.low %v81, %v129
    %v935 = vcombine.high %v81, %v129
    %v937 = vunpack.c.l.s4 1983009808
    %v938 = vunpack.c.0.s8 %v937
    %v939 = vlaneseq
    %v940 = vshrl.u32 %v939, 7
    %v941 = vsub.s32 %v938, %v940
    %v942 = vrot.slane %v934, %v941
    %v944 = vunpack.c.l.s4 1983009808
    %v945 = vunpack.c.0.s8 %v944
    %v946 = vlaneseq
    %v947 = vshrl.u32 %v946, 7
    %v948 = vsub.s32 %v945, %v947
    %v949 = vrot.slane %v935, %v948
    %v950 = vcombine.low %v153, %v201
    %v951 = vcombine.high %v153, %v201
    %v953 = vunpack.c.l.s4 1983009808
    %v954 = vunpack.c.0.s8 %v953
    %v955 = vlaneseq
    %v956 = vshrl.u32 %v955, 7
    %v957 = vsub.s32 %v954, %v956
    %v958 = vrot.slane %v950, %v957
    %v960 = vunpack.c.l.s4 1983009808
    %v961 = vunpack.c.0.s8 %v960
    %v962 = vlaneseq
    %v963 = vshrl.u32 %v962, 7
    %v964 = vsub.s32 %v961, %v963
    %v965 = vrot.slane %v951, %v964
    %v966 = vcombine.low %v177, %v225
    %v967 = vcombine.high %v177, %v225
    %v969 = vunpack.c.l.s4 1983009808
    %v970 = vunpack.c.0.s8 %v969
    %v971 = vlaneseq
    %v972 = vshrl.u32 %v971, 7
    %v973 = vsub.s32 %v970, %v972
    %v974 = vrot.slane %v966, %v973
    %v976 = vunpack.c.l.s4 1983009808
    %v977 = vunpack.c.0.s8 %v976
    %v978 = vlaneseq
    %v979 = vshrl.u32 %v978, 7
    %v980 = vsub.s32 %v977, %v979
    %v981 = vrot.slane %v967, %v980
    %v982 = vcombine.low %v926, %v942
    %v983 = vcombine.high %v926, %v942
    %v985 = vunpack.c.l.s4 1934713408
    %v986 = vunpack.c.0.s8 %v985
    %v987 = vlaneseq
    %v988 = vshrl.u32 %v987, 7
    %v989 = vsub.s32 %v986, %v988
    %v990 = vrot.slane %v982, %v989
    %v992 = vunpack.c.l.s4 1934713408
    %v993 = vunpack.c.0.s8 %v992
    %v994 = vlaneseq
    %v995 = vshrl.u32 %v994, 7
    %v996 = vsub.s32 %v993, %v995
    %v997 = vrot.slane %v983, %v996
    %v998 = vcombine.low %v933, %v949
    %v999 = vcombine.high %v933, %v949
    %v1001 = vunpack.c.l.s4 1934713408
    %v1002 = vunpack.c.0.s8 %v1001
    %v1003 = vlaneseq
    %v1004 = vshrl.u32 %v1003, 7
    %v1005 = vsub.s32 %v1002, %v1004
    %v1006 = vrot.slane %v998, %v1005
    %v1008 = vunpack.c.l.s4 1934713408
    %v1009 = vunpack.c.0.s8 %v1008
    %v1010 = vlaneseq
    %v1011 = vshrl.u32 %v1010, 7
    %v1012 = vsub.s32 %v1009, %v1011
    %v1013 = vrot.slane %v999, %v1012
    %v1014 = vcombine.low %v958, %v974
    %v1015 = vcombine.high %v958, %v974
    %v1017 = vunpack.c.l.s4 1934713408
    %v1018 = vunpack.c.0.s8 %v1017
    %v1019 = vlaneseq
    %v1020 = vshrl.u32 %v1019, 7
    %v1021 = vsub.s32 %v1018, %v1020
    %v1022 = vrot.slane %v1014, %v1021
    %v1024 = vunpack.c.l.s4 1934713408
    %v1025 = vunpack.c.0.s8 %v1024
    %v1026 = vlaneseq
    %v1027 = vshrl.u32 %v1026, 7
    %v1028 = vsub.s32 %v1025, %v1027
    %v1029 = vrot.slane %v1015, %v1028
    %v1030 = vcombine.low %v965, %v981
    %v1031 = vcombine.high %v965, %v981
    %v1033 = vunpack.c.l.s4 1934713408
    %v1034 = vunpack.c.0.s8 %v1033
    %v1035 = vlaneseq
    %v1036 = vshrl.u32 %v1035, 7
    %v1037 = vsub.s32 %v1034, %v1036
    %v1038 = vrot.slane %v1030, %v1037
    %v1040 = vunpack.c.l.s4 1934713408
    %v1041 = vunpack.c.0.s8 %v1040
    %v1042 = vlaneseq
    %v1043 = vshrl.u32 %v1042, 7
    %v1044 = vsub.s32 %v1041, %v1043
    %v1045 = vrot.slane %v1031, %v1044
    %v1046 = vcombine.low %v990, %v1022
    %v1047 = vcombine.high %v990, %v1022
    %v1048 = vcombine.low %v997, %v1029
    %v1049 = vcombine.high %v997, %v1029
    %v1050 = vcombine.low %v1006, %v1038
    %v1051 = vcombine.high %v1006, %v1038
    %v1052 = vcombine.low %v1013, %v1045
    %v1053 = vcombine.high %v1013, %v1045
    %v1054 = vcombine.low %v60, %v107
    %v1055 = vcombine.high %v60, %v107
    %v1057 = vunpack.c.l.s4 1983009808
    %v1058 = vunpack.c.0.s8 %v1057
    %v1059 = vlaneseq
    %v1060 = vshrl.u32 %v1059, 7
    %v1061 = vsub.s32 %v1058, %v1060
    %v1062 = vrot.slane %v1054, %v1061
    %v1064 = vunpack.c.l.s4 1983009808
    %v1065 = vunpack.c.0.s8 %v1064
    %v1066 = vlaneseq
    %v1067 = vshrl.u32 %v1066, 7
    %v1068 = vsub.s32 %v1065, %v1067
    %v1069 = vrot.slane %v1055, %v1068
    %v1070 = vcombine.low %v83, %v131
    %v1071 = vcombine.high %v83, %v131
    %v1073 = vunpack.c.l.s4 1983009808
    %v1074 = vunpack.c.0.s8 %v1073
    %v1075 = vlaneseq
    %v1076 = vshrl.u32 %v1075, 7
    %v1077 = vsub.s32 %v1074, %v1076
    %v1078 = vrot.slane %v1070, %v1077
    %v1080 = vunpack.c.l.s4 1983009808
    %v1081 = vunpack.c.0.s8 %v1080
    %v1082 = vlaneseq
    %v1083 = vshrl.u32 %v1082, 7
    %v1084 = vsub.s32 %v1081, %v1083
    %v1085 = vrot.slane %v1071, %v1084
    %v1086 = vcombine.low %v155, %v203
    %v1087 = vcombine.high %v155, %v203
    %v1089 = vunpack.c.l.s4 1983009808
    %v1090 = vunpack.c.0.s8 %v1089
    %v1091 = vlaneseq
    %v1092 = vshrl.u32 %v1091, 7
    %v1093 = vsub.s32 %v1090, %v1092
    %v1094 = vrot.slane %v1086, %v1093
    %v1096 = vunpack.c.l.s4 1983009808
    %v1097 = vunpack.c.0.s8 %v1096
    %v1098 = vlaneseq
    %v1099 = vshrl.u32 %v1098, 7
    %v1100 = vsub.s32 %v1097, %v1099
    %v1101 = vrot.slane %v1087, %v1100
    %v1102 = vcombine.low %v179, %v227
    %v1103 = vcombine.high %v179, %v227
    %v1105 = vunpack.c.l.s4 1983009808
    %v1106 = vunpack.c.0.s8 %v1105
    %v1107 = vlaneseq
    %v1108 = vshrl.u32 %v1107, 7
    %v1109 = vsub.s32 %v1106, %v1108
    %v1110 = vrot.slane %v1102, %v1109
    %v1112 = vunpack.c.l.s4 1983009808
    %v1113 = vunpack.c.0.s8 %v1112
    %v1114 = vlaneseq
    %v1115 = vshrl.u32 %v1114, 7
    %v1116 = vsub.s32 %v1113, %v1115
    %v1117 = vrot.slane %v1103, %v1116
    %v1118 = vcombine.low %v1062, %v1078
    %v1119 = vcombine.high %v1062, %v1078
    %v1121 = vunpack.c.l.s4 1934713408
    %v1122 = vunpack.c.0.s8 %v1121
    %v1123 = vlaneseq
    %v1124 = vshrl.u32 %v1123, 7
    %v1125 = vsub.s32 %v1122, %v1124
    %v1126 = vrot.slane %v1118, %v1125
    %v1128 = vunpack.c.l.s4 1934713408
    %v1129 = vunpack.c.0.s8 %v1128
    %v1130 = vlaneseq
    %v1131 = vshrl.u32 %v1130, 7
    %v1132 = vsub.s32 %v1129, %v1131
    %v1133 = vrot.slane %v1119, %v1132
    %v1134 = vcombine.low %v1069, %v1085
    %v1135 = vcombine.high %v1069, %v1085
    %v1137 = vunpack.c.l.s4 1934713408
    %v1138 = vunpack.c.0.s8 %v1137
    %v1139 = vlaneseq
    %v1140 = vshrl.u32 %v1139, 7
    %v1141 = vsub.s32 %v1138, %v1140
    %v1142 = vrot.slane %v1134, %v1141
    %v1144 = vunpack.c.l.s4 1934713408
    %v1145 = vunpack.c.0.s8 %v1144
    %v1146 = vlaneseq
    %v1147 = vshrl.u32 %v1146, 7
    %v1148 = vsub.s32 %v1145, %v1147
    %v1149 = vrot.slane %v1135, %v1148
    %v1150 = vcombine.low %v1094, %v1110
    %v1151 = vcombine.high %v1094, %v1110
    %v1153 = vunpack.c.l.s4 1934713408
    %v1154 = vunpack.c.0.s8 %v1153
    %v1155 = vlaneseq
    %v1156 = vshrl.u32 %v1155, 7
    %v1157 = vsub.s32 %v1154, %v1156
    %v1158 = vrot.slane %v1150, %v1157
    %v1160 = vunpack.c.l.s4 1934713408
    %v1161 = vunpack.c.0.s8 %v1160
    %v1162 = vlaneseq
    %v1163 = vshrl.u32 %v1162, 7
    %v1164 = vsub.s32 %v1161, %v1163
    %v1165 = vrot.slane %v1151, %v1164
    %v1166 = vcombine.low %v1101, %v1117
    %v1167 = vcombine.high %v1101, %v1117
    %v1169 = vunpack.c.l.s4 1934713408
    %v1170 = vunpack.c.0.s8 %v1169
    %v1171 = vlaneseq
    %v1172 = vshrl.u32 %v1171, 7
    %v1173 = vsub.s32 %v1170, %v1172
    %v1174 = vrot.slane %v1166, %v1173
    %v1176 = vunpack.c.l.s4 1934713408
    %v1177 = vunpack.c.0.s8 %v1176
    %v1178 = vlaneseq
    %v1179 = vshrl.u32 %v1178, 7
    %v1180 = vsub.s32 %v1177, %v1179
    %v1181 = vrot.slane %v1167, %v1180
    %v1182 = vcombine.low %v1126, %v1158
    %v1183 = vcombine.high %v1126, %v1158
    %v1184 = vcombine.low %v1133, %v1165
    %v1185 = vcombine.high %v1133, %v1165
    %v1186 = vcombine.low %v1142, %v1174
    %v1187 = vcombine.high %v1142, %v1174
    %v1188 = vcombine.low %v1149, %v1181
    %v1189 = vcombine.high %v1149, %v1181
    %v1190 = vcombine.low %v61, %v109
    %v1191 = vcombine.high %v61, %v109
    %v1193 = vunpack.c.l.s4 1983009808
    %v1194 = vunpack.c.0.s8 %v1193
    %v1195 = vlaneseq
    %v1196 = vshrl.u32 %v1195, 7
    %v1197 = vsub.s32 %v1194, %v1196
    %v1198 = vrot.slane %v1190, %v1197
    %v1200 = vunpack.c.l.s4 1983009808
    %v1201 = vunpack.c.0.s8 %v1200
    %v1202 = vlaneseq
    %v1203 = vshrl.u32 %v1202, 7
    %v1204 = vsub.s32 %v1201, %v1203
    %v1205 = vrot.slane %v1191, %v1204
    %v1206 = vcombine.low %v85, %v133
    %v1207 = vcombine.high %v85, %v133
    %v1209 = vunpack.c.l.s4 1983009808
    %v1210 = vunpack.c.0.s8 %v1209
    %v1211 = vlaneseq
    %v1212 = vshrl.u32 %v1211, 7
    %v1213 = vsub.s32 %v1210, %v1212
    %v1214 = vrot.slane %v1206, %v1213
    %v1216 = vunpack.c.l.s4 1983009808
    %v1217 = vunpack.c.0.s8 %v1216
    %v1218 = vlaneseq
    %v1219 = vshrl.u32 %v1218, 7
    %v1220 = vsub.s32 %v1217, %v1219
    %v1221 = vrot.slane %v1207, %v1220
    %v1222 = vcombine.low %v157, %v205
    %v1223 = vcombine.high %v157, %v205
    %v1225 = vunpack.c.l.s4 1983009808
    %v1226 = vunpack.c.0.s8 %v1225
    %v1227 = vlaneseq
    %v1228 = vshrl.u32 %v1227, 7
    %v1229 = vsub.s32 %v1226, %v1228
    %v1230 = vrot.slane %v1222, %v1229
    %v1232 = vunpack.c.l.s4 1983009808
    %v1233 = vunpack.c.0.s8 %v1232
    %v1234 = vlaneseq
    %v1235 = vshrl.u32 %v1234, 7
    %v1236 = vsub.s32 %v1233, %v1235
    %v1237 = vrot.slane %v1223, %v1236
    %v1238 = vcombine.low %v181, %v229
    %v1239 = vcombine.high %v181, %v229
    %v1241 = vunpack.c.l.s4 1983009808
    %v1242 = vunpack.c.0.s8 %v1241
    %v1243 = vlaneseq
    %v1244 = vshrl.u32 %v1243, 7
    %v1245 = vsub.s32 %v1242, %v1244
    %v1246 = vrot.slane %v1238, %v1245
    %v1248 = vunpack.c.l.s4 1983009808
    %v1249 = vunpack.c.0.s8 %v1248
    %v1250 = vlaneseq
    %v1251 = vshrl.u32 %v1250, 7
    %v1252 = vsub.s32 %v1249, %v1251
    %v1253 = vrot.slane %v1239, %v1252
    %v1254 = vcombine.low %v1198, %v1214
    %v1255 = vcombine.high %v1198, %v1214
    %v1257 = vunpack.c.l.s4 1934713408
    %v1258 = vunpack.c.0.s8 %v1257
    %v1259 = vlaneseq
    %v1260 = vshrl.u32 %v1259, 7
    %v1261 = vsub.s32 %v1258, %v1260
    %v1262 = vrot.slane %v1254, %v1261
    %v1264 = vunpack.c.l.s4 1934713408
    %v1265 = vunpack.c.0.s8 %v1264
    %v1266 = vlaneseq
    %v1267 = vshrl.u32 %v1266, 7
    %v1268 = vsub.s32 %v1265, %v1267
    %v1269 = vrot.slane %v1255, %v1268
    %v1270 = vcombine.low %v1205, %v1221
    %v1271 = vcombine.high %v1205, %v1221
    %v1273 = vunpack.c.l.s4 1934713408
    %v1274 = vunpack.c.0.s8 %v1273
    %v1275 = vlaneseq
    %v1276 = vshrl.u32 %v1275, 7
    %v1277 = vsub.s32 %v1274, %v1276
    %v1278 = vrot.slane %v1270, %v1277
    %v1280 = vunpack.c.l.s4 1934713408
    %v1281 = vunpack.c.0.s8 %v1280
    %v1282 = vlaneseq
    %v1283 = vshrl.u32 %v1282, 7
    %v1284 = vsub.s32 %v1281, %v1283
    %v1285 = vrot.slane %v1271, %v1284
    %v1286 = vcombine.low %v1230, %v1246
    %v1287 = vcombine.high %v1230, %v1246
    %v1289 = vunpack.c.l.s4 1934713408
    %v1290 = vunpack.c.0.s8 %v1289
    %v1291 = vlaneseq
    %v1292 = vshrl.u32 %v1291, 7
    %v1293 = vsub.s32 %v1290, %v1292
    %v1294 = vrot.slane %v1286, %v1293
    %v1296 = vunpack.c.l.s4 1934713408
    %v1297 = vunpack.c.0.s8 %v1296
    %v1298 = vlaneseq
    %v1299 = vshrl.u32 %v1298, 7
    %v1300 = vsub.s32 %v1297, %v1299
    %v1301 = vrot.slane %v1287, %v1300
    %v1302 = vcombine.low %v1237, %v1253
    %v1303 = vcombine.high %v1237, %v1253
    %v1305 = vunpack.c.l.s4 1934713408
    %v1306 = vunpack.c.0.s8 %v1305
    %v1307 = vlaneseq
    %v1308 = vshrl.u32 %v1307, 7
    %v1309 = vsub.s32 %v1306, %v1308
    %v1310 = vrot.slane %v1302, %v1309
    %v1312 = vunpack.c.l.s4 1934713408
    %v1313 = vunpack.c.0.s8 %v1312
    %v1314 = vlaneseq
    %v1315 = vshrl.u32 %v1314, 7
    %v1316 = vsub.s32 %v1313, %v1315
    %v1317 = vrot.slane %v1303, %v1316
    %v1318 = vcombine.low %v1262, %v1294
    %v1319 = vcombine.high %v1262, %v1294
    %v1320 = vcombine.low %v1269, %v1301
    %v1321 = vcombine.high %v1269, %v1301
    %v1322 = vcombine.low %v1278, %v1310
    %v1323 = vcombine.high %v1278, %v1310
    %v1324 = vcombine.low %v1285, %v1317
    %v1325 = vcombine.high %v1285, %v1317
    %vm1326 = vcmask 15360
    %v1327 = vsel %vm1326, %v366, -inf
    %1328 = vmax.xlane.f32.xlu0 %v1327
    %v1329 = vpop.xlane.xlu0 %1328
    %v1330 = vsel %vm1326, %v367, -inf
    %1331 = vmax.xlane.f32.xlu0 %v1330
    %v1332 = vpop.xlane.xlu0 %1331
    %v1333 = vsel %vm1326, %v368, -inf
    %1334 = vmax.xlane.f32.xlu0 %v1333
    %v1335 = vpop.xlane.xlu0 %1334
    %v1336 = vsel %vm1326, %v369, -inf
    %1337 = vmax.xlane.f32.xlu0 %v1336
    %v1338 = vpop.xlane.xlu0 %1337
    %v1339 = vsel %vm1326, %v370, -inf
    %1340 = vmax.xlane.f32.xlu0 %v1339
    %v1341 = vpop.xlane.xlu0 %1340
    %v1342 = vsel %vm1326, %v371, -inf
    %1343 = vmax.xlane.f32.xlu0 %v1342
    %v1344 = vpop.xlane.xlu0 %1343
    %v1345 = vsel %vm1326, %v372, -inf
    %1346 = vmax.xlane.f32.xlu0 %v1345
    %v1347 = vpop.xlane.xlu0 %1346
    %v1348 = vsel %vm1326, %v373, -inf
    %1349 = vmax.xlane.f32.xlu0 %v1348
    %v1350 = vpop.xlane.xlu0 %1349
    %v1351 = vsel %vm1326, %v502, -inf
    %1352 = vmax.xlane.f32.xlu0 %v1351
    %v1353 = vpop.xlane.xlu0 %1352
    %v1354 = vsel %vm1326, %v503, -inf
    %1355 = vmax.xlane.f32.xlu0 %v1354
    %v1356 = vpop.xlane.xlu0 %1355
    %v1357 = vsel %vm1326, %v504, -inf
    %1358 = vmax.xlane.f32.xlu0 %v1357
    %v1359 = vpop.xlane.xlu0 %1358
    %v1360 = vsel %vm1326, %v505, -inf
    %1361 = vmax.xlane.f32.xlu0 %v1360
    %v1362 = vpop.xlane.xlu0 %1361
    %v1363 = vsel %vm1326, %v506, -inf
    %1364 = vmax.xlane.f32.xlu0 %v1363
    %v1365 = vpop.xlane.xlu0 %1364
    %v1366 = vsel %vm1326, %v507, -inf
    %1367 = vmax.xlane.f32.xlu0 %v1366
    %v1368 = vpop.xlane.xlu0 %1367
    %v1369 = vsel %vm1326, %v508, -inf
    %1370 = vmax.xlane.f32.xlu0 %v1369
    %v1371 = vpop.xlane.xlu0 %1370
    %v1372 = vsel %vm1326, %v509, -inf
    %1373 = vmax.xlane.f32.xlu0 %v1372
    %v1374 = vpop.xlane.xlu0 %1373
    %v1375 = vsel %vm1326, %v638, -inf
    %1376 = vmax.xlane.f32.xlu0 %v1375
    %v1377 = vpop.xlane.xlu0 %1376
    %v1378 = vsel %vm1326, %v639, -inf
    %1379 = vmax.xlane.f32.xlu0 %v1378
    %v1380 = vpop.xlane.xlu0 %1379
    %v1381 = vsel %vm1326, %v640, -inf
    %1382 = vmax.xlane.f32.xlu0 %v1381
    %v1383 = vpop.xlane.xlu0 %1382
    %v1384 = vsel %vm1326, %v641, -inf
    %1385 = vmax.xlane.f32.xlu0 %v1384
    %v1386 = vpop.xlane.xlu0 %1385
    %v1387 = vsel %vm1326, %v642, -inf
    %1388 = vmax.xlane.f32.xlu0 %v1387
    %v1389 = vpop.xlane.xlu0 %1388
    %v1390 = vsel %vm1326, %v643, -inf
    %1391 = vmax.xlane.f32.xlu0 %v1390
    %v1392 = vpop.xlane.xlu0 %1391
    %v1393 = vsel %vm1326, %v644, -inf
    %1394 = vmax.xlane.f32.xlu0 %v1393
    %v1395 = vpop.xlane.xlu0 %1394
    %v1396 = vsel %vm1326, %v645, -inf
    %1397 = vmax.xlane.f32.xlu0 %v1396
    %v1398 = vpop.xlane.xlu0 %1397
    %v1399 = vsel %vm1326, %v774, -inf
    %1400 = vmax.xlane.f32.xlu0 %v1399
    %v1401 = vpop.xlane.xlu0 %1400
    %v1402 = vsel %vm1326, %v775, -inf
    %1403 = vmax.xlane.f32.xlu0 %v1402
    %v1404 = vpop.xlane.xlu0 %1403
    %v1405 = vsel %vm1326, %v776, -inf
    %1406 = vmax.xlane.f32.xlu0 %v1405
    %v1407 = vpop.xlane.xlu0 %1406
    %v1408 = vsel %vm1326, %v777, -inf
    %1409 = vmax.xlane.f32.xlu0 %v1408
    %v1410 = vpop.xlane.xlu0 %1409
    %v1411 = vsel %vm1326, %v778, -inf
    %1412 = vmax.xlane.f32.xlu0 %v1411
    %v1413 = vpop.xlane.xlu0 %1412
    %v1414 = vsel %vm1326, %v779, -inf
    %1415 = vmax.xlane.f32.xlu0 %v1414
    %v1416 = vpop.xlane.xlu0 %1415
    %v1417 = vsel %vm1326, %v780, -inf
    %1418 = vmax.xlane.f32.xlu0 %v1417
    %v1419 = vpop.xlane.xlu0 %1418
    %v1420 = vsel %vm1326, %v781, -inf
    %1421 = vmax.xlane.f32.xlu0 %v1420
    %v1422 = vpop.xlane.xlu0 %1421
    %v1423 = vsel %vm1326, %v910, -inf
    %1424 = vmax.xlane.f32.xlu0 %v1423
    %v1425 = vpop.xlane.xlu0 %1424
    %v1426 = vsel %vm1326, %v911, -inf
    %1427 = vmax.xlane.f32.xlu0 %v1426
    %v1428 = vpop.xlane.xlu0 %1427
    %v1429 = vsel %vm1326, %v912, -inf
    %1430 = vmax.xlane.f32.xlu0 %v1429
    %v1431 = vpop.xlane.xlu0 %1430
    %v1432 = vsel %vm1326, %v913, -inf
    %1433 = vmax.xlane.f32.xlu0 %v1432
    %v1434 = vpop.xlane.xlu0 %1433
    %v1435 = vsel %vm1326, %v914, -inf
    %1436 = vmax.xlane.f32.xlu0 %v1435
    %v1437 = vpop.xlane.xlu0 %1436
    %v1438 = vsel %vm1326, %v915, -inf
    %1439 = vmax.xlane.f32.xlu0 %v1438
    %v1440 = vpop.xlane.xlu0 %1439
    %v1441 = vsel %vm1326, %v916, -inf
    %1442 = vmax.xlane.f32.xlu0 %v1441
    %v1443 = vpop.xlane.xlu0 %1442
    %v1444 = vsel %vm1326, %v917, -inf
    %1445 = vmax.xlane.f32.xlu0 %v1444
    %v1446 = vpop.xlane.xlu0 %1445
    %v1447 = vsel %vm1326, %v1046, -inf
    %1448 = vmax.xlane.f32.xlu0 %v1447
    %v1449 = vpop.xlane.xlu0 %1448
    %v1450 = vsel %vm1326, %v1047, -inf
    %1451 = vmax.xlane.f32.xlu0 %v1450
    %v1452 = vpop.xlane.xlu0 %1451
    %v1453 = vsel %vm1326, %v1048, -inf
    %1454 = vmax.xlane.f32.xlu0 %v1453
    %v1455 = vpop.xlane.xlu0 %1454
    %v1456 = vsel %vm1326, %v1049, -inf
    %1457 = vmax.xlane.f32.xlu0 %v1456
    %v1458 = vpop.xlane.xlu0 %1457
    %v1459 = vsel %vm1326, %v1050, -inf
    %1460 = vmax.xlane.f32.xlu0 %v1459
    %v1461 = vpop.xlane.xlu0 %1460
    %v1462 = vsel %vm1326, %v1051, -inf
    %1463 = vmax.xlane.f32.xlu0 %v1462
    %v1464 = vpop.xlane.xlu0 %1463
    %v1465 = vsel %vm1326, %v1052, -inf
    %1466 = vmax.xlane.f32.xlu0 %v1465
    %v1467 = vpop.xlane.xlu0 %1466
    %v1468 = vsel %vm1326, %v1053, -inf
    %1469 = vmax.xlane.f32.xlu0 %v1468
    %v1470 = vpop.xlane.xlu0 %1469
    %v1471 = vsel %vm1326, %v1182, -inf
    %1472 = vmax.xlane.f32.xlu0 %v1471
    %v1473 = vpop.xlane.xlu0 %1472
    %v1474 = vsel %vm1326, %v1183, -inf
    %1475 = vmax.xlane.f32.xlu0 %v1474
    %v1476 = vpop.xlane.xlu0 %1475
    %v1477 = vsel %vm1326, %v1184, -inf
    %1478 = vmax.xlane.f32.xlu0 %v1477
    %v1479 = vpop.xlane.xlu0 %1478
    %v1480 = vsel %vm1326, %v1185, -inf
    %1481 = vmax.xlane.f32.xlu0 %v1480
    %v1482 = vpop.xlane.xlu0 %1481
    %v1483 = vsel %vm1326, %v1186, -inf
    %1484 = vmax.xlane.f32.xlu0 %v1483
    %v1485 = vpop.xlane.xlu0 %1484
    %v1486 = vsel %vm1326, %v1187, -inf
    %1487 = vmax.xlane.f32.xlu0 %v1486
    %v1488 = vpop.xlane.xlu0 %1487
    %v1489 = vsel %vm1326, %v1188, -inf
    %1490 = vmax.xlane.f32.xlu0 %v1489
    %v1491 = vpop.xlane.xlu0 %1490
    %v1492 = vsel %vm1326, %v1189, -inf
    %1493 = vmax.xlane.f32.xlu0 %v1492
    %v1494 = vpop.xlane.xlu0 %1493
    %v1495 = vsel %vm1326, %v1318, -inf
    %1496 = vmax.xlane.f32.xlu0 %v1495
    %v1497 = vpop.xlane.xlu0 %1496
    %v1498 = vsel %vm1326, %v1319, -inf
    %1499 = vmax.xlane.f32.xlu0 %v1498
    %v1500 = vpop.xlane.xlu0 %1499
    %v1501 = vsel %vm1326, %v1320, -inf
    %1502 = vmax.xlane.f32.xlu0 %v1501
    %v1503 = vpop.xlane.xlu0 %1502
    %v1504 = vsel %vm1326, %v1321, -inf
    %1505 = vmax.xlane.f32.xlu0 %v1504
    %v1506 = vpop.xlane.xlu0 %1505
    %v1507 = vsel %vm1326, %v1322, -inf
    %1508 = vmax.xlane.f32.xlu0 %v1507
    %v1509 = vpop.xlane.xlu0 %1508
    %v1510 = vsel %vm1326, %v1323, -inf
    %1511 = vmax.xlane.f32.xlu0 %v1510
    %v1512 = vpop.xlane.xlu0 %1511
    %v1513 = vsel %vm1326, %v1324, -inf
    %1514 = vmax.xlane.f32.xlu0 %v1513
    %v1515 = vpop.xlane.xlu0 %1514
    %v1516 = vsel %vm1326, %v1325, -inf
    %1517 = vmax.xlane.f32.xlu0 %v1516
    %v1518 = vpop.xlane.xlu0 %1517
    %v1583 = vlaneseq
    %v1584 = vand.u32 %v1583, 127
    %v1585 = vlaneseq
    %v1586 = vshrl.u32 %v1585, 7
    %v1587 = vsub.s32 %v1584, %v1586
    %v1588 = vrot.slane %v1329, %v1587
    %v1589 = vlaneseq
    %v1590 = vshrl.u32 %v1589, 7
    %v1591 = vsub.s32 %v1584, %v1590
    %v1592 = vrot.slane %v1332, %v1591
    %v1593 = vlaneseq
    %v1594 = vshrl.u32 %v1593, 7
    %v1595 = vsub.s32 %v1584, %v1594
    %v1596 = vrot.slane %v1335, %v1595
    %v1597 = vlaneseq
    %v1598 = vshrl.u32 %v1597, 7
    %v1599 = vsub.s32 %v1584, %v1598
    %v1600 = vrot.slane %v1338, %v1599
    %v1601 = vlaneseq
    %v1602 = vshrl.u32 %v1601, 7
    %v1603 = vsub.s32 %v1584, %v1602
    %v1604 = vrot.slane %v1341, %v1603
    %v1605 = vlaneseq
    %v1606 = vshrl.u32 %v1605, 7
    %v1607 = vsub.s32 %v1584, %v1606
    %v1608 = vrot.slane %v1344, %v1607
    %v1609 = vlaneseq
    %v1610 = vshrl.u32 %v1609, 7
    %v1611 = vsub.s32 %v1584, %v1610
    %v1612 = vrot.slane %v1347, %v1611
    %v1613 = vlaneseq
    %v1614 = vshrl.u32 %v1613, 7
    %v1615 = vsub.s32 %v1584, %v1614
    %v1616 = vrot.slane %v1350, %v1615
    %v1617 = vlaneseq
    %v1618 = vshrl.u32 %v1617, 7
    %v1619 = vsub.s32 %v1584, %v1618
    %v1620 = vrot.slane %v1353, %v1619
    %v1621 = vlaneseq
    %v1622 = vshrl.u32 %v1621, 7
    %v1623 = vsub.s32 %v1584, %v1622
    %v1624 = vrot.slane %v1356, %v1623
    %v1625 = vlaneseq
    %v1626 = vshrl.u32 %v1625, 7
    %v1627 = vsub.s32 %v1584, %v1626
    %v1628 = vrot.slane %v1359, %v1627
    %v1629 = vlaneseq
    %v1630 = vshrl.u32 %v1629, 7
    %v1631 = vsub.s32 %v1584, %v1630
    %v1632 = vrot.slane %v1362, %v1631
    %v1633 = vlaneseq
    %v1634 = vshrl.u32 %v1633, 7
    %v1635 = vsub.s32 %v1584, %v1634
    %v1636 = vrot.slane %v1365, %v1635
    %v1637 = vlaneseq
    %v1638 = vshrl.u32 %v1637, 7
    %v1639 = vsub.s32 %v1584, %v1638
    %v1640 = vrot.slane %v1368, %v1639
    %v1641 = vlaneseq
    %v1642 = vshrl.u32 %v1641, 7
    %v1643 = vsub.s32 %v1584, %v1642
    %v1644 = vrot.slane %v1371, %v1643
    %v1645 = vlaneseq
    %v1646 = vshrl.u32 %v1645, 7
    %v1647 = vsub.s32 %v1584, %v1646
    %v1648 = vrot.slane %v1374, %v1647
    %v1649 = vlaneseq
    %v1650 = vshrl.u32 %v1649, 7
    %v1651 = vsub.s32 %v1584, %v1650
    %v1652 = vrot.slane %v1377, %v1651
    %v1653 = vlaneseq
    %v1654 = vshrl.u32 %v1653, 7
    %v1655 = vsub.s32 %v1584, %v1654
    %v1656 = vrot.slane %v1380, %v1655
    %v1657 = vlaneseq
    %v1658 = vshrl.u32 %v1657, 7
    %v1659 = vsub.s32 %v1584, %v1658
    %v1660 = vrot.slane %v1383, %v1659
    %v1661 = vlaneseq
    %v1662 = vshrl.u32 %v1661, 7
    %v1663 = vsub.s32 %v1584, %v1662
    %v1664 = vrot.slane %v1386, %v1663
    %v1665 = vlaneseq
    %v1666 = vshrl.u32 %v1665, 7
    %v1667 = vsub.s32 %v1584, %v1666
    %v1668 = vrot.slane %v1389, %v1667
    %v1669 = vlaneseq
    %v1670 = vshrl.u32 %v1669, 7
    %v1671 = vsub.s32 %v1584, %v1670
    %v1672 = vrot.slane %v1392, %v1671
    %v1673 = vlaneseq
    %v1674 = vshrl.u32 %v1673, 7
    %v1675 = vsub.s32 %v1584, %v1674
    %v1676 = vrot.slane %v1395, %v1675
    %v1677 = vlaneseq
    %v1678 = vshrl.u32 %v1677, 7
    %v1679 = vsub.s32 %v1584, %v1678
    %v1680 = vrot.slane %v1398, %v1679
    %v1681 = vlaneseq
    %v1682 = vshrl.u32 %v1681, 7
    %v1683 = vsub.s32 %v1584, %v1682
    %v1684 = vrot.slane %v1401, %v1683
    %v1685 = vlaneseq
    %v1686 = vshrl.u32 %v1685, 7
    %v1687 = vsub.s32 %v1584, %v1686
    %v1688 = vrot.slane %v1404, %v1687
    %v1689 = vlaneseq
    %v1690 = vshrl.u32 %v1689, 7
    %v1691 = vsub.s32 %v1584, %v1690
    %v1692 = vrot.slane %v1407, %v1691
    %v1693 = vlaneseq
    %v1694 = vshrl.u32 %v1693, 7
    %v1695 = vsub.s32 %v1584, %v1694
    %v1696 = vrot.slane %v1410, %v1695
    %v1697 = vlaneseq
    %v1698 = vshrl.u32 %v1697, 7
    %v1699 = vsub.s32 %v1584, %v1698
    %v1700 = vrot.slane %v1413, %v1699
    %v1701 = vlaneseq
    %v1702 = vshrl.u32 %v1701, 7
    %v1703 = vsub.s32 %v1584, %v1702
    %v1704 = vrot.slane %v1416, %v1703
    %v1705 = vlaneseq
    %v1706 = vshrl.u32 %v1705, 7
    %v1707 = vsub.s32 %v1584, %v1706
    %v1708 = vrot.slane %v1419, %v1707
    %v1709 = vlaneseq
    %v1710 = vshrl.u32 %v1709, 7
    %v1711 = vsub.s32 %v1584, %v1710
    %v1712 = vrot.slane %v1422, %v1711
    %v1713 = vlaneseq
    %v1714 = vshrl.u32 %v1713, 7
    %v1715 = vsub.s32 %v1584, %v1714
    %v1716 = vrot.slane %v1425, %v1715
    %v1717 = vlaneseq
    %v1718 = vshrl.u32 %v1717, 7
    %v1719 = vsub.s32 %v1584, %v1718
    %v1720 = vrot.slane %v1428, %v1719
    %v1721 = vlaneseq
    %v1722 = vshrl.u32 %v1721, 7
    %v1723 = vsub.s32 %v1584, %v1722
    %v1724 = vrot.slane %v1431, %v1723
    %v1725 = vlaneseq
    %v1726 = vshrl.u32 %v1725, 7
    %v1727 = vsub.s32 %v1584, %v1726
    %v1728 = vrot.slane %v1434, %v1727
    %v1729 = vlaneseq
    %v1730 = vshrl.u32 %v1729, 7
    %v1731 = vsub.s32 %v1584, %v1730
    %v1732 = vrot.slane %v1437, %v1731
    %v1733 = vlaneseq
    %v1734 = vshrl.u32 %v1733, 7
    %v1735 = vsub.s32 %v1584, %v1734
    %v1736 = vrot.slane %v1440, %v1735
    %v1737 = vlaneseq
    %v1738 = vshrl.u32 %v1737, 7
    %v1739 = vsub.s32 %v1584, %v1738
    %v1740 = vrot.slane %v1443, %v1739
    %v1741 = vlaneseq
    %v1742 = vshrl.u32 %v1741, 7
    %v1743 = vsub.s32 %v1584, %v1742
    %v1744 = vrot.slane %v1446, %v1743
    %v1745 = vlaneseq
    %v1746 = vshrl.u32 %v1745, 7
    %v1747 = vsub.s32 %v1584, %v1746
    %v1748 = vrot.slane %v1449, %v1747
    %v1749 = vlaneseq
    %v1750 = vshrl.u32 %v1749, 7
    %v1751 = vsub.s32 %v1584, %v1750
    %v1752 = vrot.slane %v1452, %v1751
    %v1753 = vlaneseq
    %v1754 = vshrl.u32 %v1753, 7
    %v1755 = vsub.s32 %v1584, %v1754
    %v1756 = vrot.slane %v1455, %v1755
    %v1757 = vlaneseq
    %v1758 = vshrl.u32 %v1757, 7
    %v1759 = vsub.s32 %v1584, %v1758
    %v1760 = vrot.slane %v1458, %v1759
    %v1761 = vlaneseq
    %v1762 = vshrl.u32 %v1761, 7
    %v1763 = vsub.s32 %v1584, %v1762
    %v1764 = vrot.slane %v1461, %v1763
    %v1765 = vlaneseq
    %v1766 = vshrl.u32 %v1765, 7
    %v1767 = vsub.s32 %v1584, %v1766
    %v1768 = vrot.slane %v1464, %v1767
    %v1769 = vlaneseq
    %v1770 = vshrl.u32 %v1769, 7
    %v1771 = vsub.s32 %v1584, %v1770
    %v1772 = vrot.slane %v1467, %v1771
    %v1773 = vlaneseq
    %v1774 = vshrl.u32 %v1773, 7
    %v1775 = vsub.s32 %v1584, %v1774
    %v1776 = vrot.slane %v1470, %v1775
    %v1777 = vlaneseq
    %v1778 = vshrl.u32 %v1777, 7
    %v1779 = vsub.s32 %v1584, %v1778
    %v1780 = vrot.slane %v1473, %v1779
    %v1781 = vlaneseq
    %v1782 = vshrl.u32 %v1781, 7
    %v1783 = vsub.s32 %v1584, %v1782
    %v1784 = vrot.slane %v1476, %v1783
    %v1785 = vlaneseq
    %v1786 = vshrl.u32 %v1785, 7
    %v1787 = vsub.s32 %v1584, %v1786
    %v1788 = vrot.slane %v1479, %v1787
    %v1789 = vlaneseq
    %v1790 = vshrl.u32 %v1789, 7
    %v1791 = vsub.s32 %v1584, %v1790
    %v1792 = vrot.slane %v1482, %v1791
    %v1793 = vlaneseq
    %v1794 = vshrl.u32 %v1793, 7
    %v1795 = vsub.s32 %v1584, %v1794
    %v1796 = vrot.slane %v1485, %v1795
    %v1797 = vlaneseq
    %v1798 = vshrl.u32 %v1797, 7
    %v1799 = vsub.s32 %v1584, %v1798
    %v1800 = vrot.slane %v1488, %v1799
    %v1801 = vlaneseq
    %v1802 = vshrl.u32 %v1801, 7
    %v1803 = vsub.s32 %v1584, %v1802
    %v1804 = vrot.slane %v1491, %v1803
    %v1805 = vlaneseq
    %v1806 = vshrl.u32 %v1805, 7
    %v1807 = vsub.s32 %v1584, %v1806
    %v1808 = vrot.slane %v1494, %v1807
    %v1809 = vlaneseq
    %v1810 = vshrl.u32 %v1809, 7
    %v1811 = vsub.s32 %v1584, %v1810
    %v1812 = vrot.slane %v1497, %v1811
    %v1813 = vlaneseq
    %v1814 = vshrl.u32 %v1813, 7
    %v1815 = vsub.s32 %v1584, %v1814
    %v1816 = vrot.slane %v1500, %v1815
    %v1817 = vlaneseq
    %v1818 = vshrl.u32 %v1817, 7
    %v1819 = vsub.s32 %v1584, %v1818
    %v1820 = vrot.slane %v1503, %v1819
    %v1821 = vlaneseq
    %v1822 = vshrl.u32 %v1821, 7
    %v1823 = vsub.s32 %v1584, %v1822
    %v1824 = vrot.slane %v1506, %v1823
    %v1825 = vlaneseq
    %v1826 = vshrl.u32 %v1825, 7
    %v1827 = vsub.s32 %v1584, %v1826
    %v1828 = vrot.slane %v1509, %v1827
    %v1829 = vlaneseq
    %v1830 = vshrl.u32 %v1829, 7
    %v1831 = vsub.s32 %v1584, %v1830
    %v1832 = vrot.slane %v1512, %v1831
    %v1833 = vlaneseq
    %v1834 = vshrl.u32 %v1833, 7
    %v1835 = vsub.s32 %v1584, %v1834
    %v1836 = vrot.slane %v1515, %v1835
    %v1837 = vlaneseq
    %v1838 = vshrl.u32 %v1837, 7
    %v1839 = vsub.s32 %v1584, %v1838
    %v1840 = vrot.slane %v1518, %v1839
    %vm1841 = vcmask 1041409
    %v1842 = vsel %vm1841, %v1592, %v1588
    %vm1843 = vcmask 1042434
    %v1844 = vsel %vm1843, %v1596, %v1842
    %vm1845 = vcmask 1043459
    %v1846 = vsel %vm1845, %v1600, %v1844
    %vm1847 = vcmask 1044484
    %v1848 = vsel %vm1847, %v1604, %v1846
    %vm1849 = vcmask 1045509
    %v1850 = vsel %vm1849, %v1608, %v1848
    %vm1851 = vcmask 1046534
    %v1852 = vsel %vm1851, %v1612, %v1850
    %vm1853 = vcmask 1047559
    %v1854 = vsel %vm1853, %v1616, %v1852
    %v1855 = vsel %vm1841, %v1624, %v1620
    %v1856 = vsel %vm1843, %v1628, %v1855
    %v1857 = vsel %vm1845, %v1632, %v1856
    %v1858 = vsel %vm1847, %v1636, %v1857
    %v1859 = vsel %vm1849, %v1640, %v1858
    %v1860 = vsel %vm1851, %v1644, %v1859
    %v1861 = vsel %vm1853, %v1648, %v1860
    %v1862 = vsel %vm1841, %v1656, %v1652
    %v1863 = vsel %vm1843, %v1660, %v1862
    %v1864 = vsel %vm1845, %v1664, %v1863
    %v1865 = vsel %vm1847, %v1668, %v1864
    %v1866 = vsel %vm1849, %v1672, %v1865
    %v1867 = vsel %vm1851, %v1676, %v1866
    %v1868 = vsel %vm1853, %v1680, %v1867
    %v1869 = vsel %vm1841, %v1688, %v1684
    %v1870 = vsel %vm1843, %v1692, %v1869
    %v1871 = vsel %vm1845, %v1696, %v1870
    %v1872 = vsel %vm1847, %v1700, %v1871
    %v1873 = vsel %vm1849, %v1704, %v1872
    %v1874 = vsel %vm1851, %v1708, %v1873
    %v1875 = vsel %vm1853, %v1712, %v1874
    %v1876 = vsel %vm1841, %v1720, %v1716
    %v1877 = vsel %vm1843, %v1724, %v1876
    %v1878 = vsel %vm1845, %v1728, %v1877
    %v1879 = vsel %vm1847, %v1732, %v1878
    %v1880 = vsel %vm1849, %v1736, %v1879
    %v1881 = vsel %vm1851, %v1740, %v1880
    %v1882 = vsel %vm1853, %v1744, %v1881
    %v1883 = vsel %vm1841, %v1752, %v1748
    %v1884 = vsel %vm1843, %v1756, %v1883
    %v1885 = vsel %vm1845, %v1760, %v1884
    %v1886 = vsel %vm1847, %v1764, %v1885
    %v1887 = vsel %vm1849, %v1768, %v1886
    %v1888 = vsel %vm1851, %v1772, %v1887
    %v1889 = vsel %vm1853, %v1776, %v1888
    %v1890 = vsel %vm1841, %v1784, %v1780
    %v1891 = vsel %vm1843, %v1788, %v1890
    %v1892 = vsel %vm1845, %v1792, %v1891
    %v1893 = vsel %vm1847, %v1796, %v1892
    %v1894 = vsel %vm1849, %v1800, %v1893
    %v1895 = vsel %vm1851, %v1804, %v1894
    %v1896 = vsel %vm1853, %v1808, %v1895
    %v1897 = vsel %vm1841, %v1816, %v1812
    %v1898 = vsel %vm1843, %v1820, %v1897
    %v1899 = vsel %vm1845, %v1824, %v1898
    %v1900 = vsel %vm1847, %v1828, %v1899
    %v1901 = vsel %vm1849, %v1832, %v1900
    %v1902 = vsel %vm1851, %v1836, %v1901
    %v1903 = vsel %vm1853, %v1840, %v1902
    %vm1912 = vcmask 64512
    %1913 = vst.msk [vmem:[#allocation5] sm:$0xff] %vm1912, %v1854
    %1914 = vst.msk [vmem:[#allocation5 + $0x8] sm:$0xff] %vm1912, %v1861
    %1915 = vst.msk [vmem:[#allocation5 + $0x10] sm:$0xff] %vm1912, %v1868
    %1916 = vst.msk [vmem:[#allocation5 + $0x18] sm:$0xff] %vm1912, %v1875
    %1917 = vst.msk [vmem:[#allocation5 + $0x20] sm:$0xff] %vm1912, %v1882
    %1918 = vst.msk [vmem:[#allocation5 + $0x28] sm:$0xff] %vm1912, %v1889
    %1919 = vst.msk [vmem:[#allocation5 + $0x30] sm:$0xff] %vm1912, %v1896
    %1920 = vst.msk [vmem:[#allocation5 + $0x38] sm:$0xff] %vm1912, %v1903
    // Predicated region
    $region10: #{tpu_custom_call.1} parent=1 // pred_check
      _
    $region11: #{tpu_custom_call.1} parent=1 // pred_check_branch
      %1922 = sbr.rel (0) target = $region13
    $region12: #{tpu_custom_call.1} parent=1 // pred_region
      %s1924 = ssub.s32 1024, 1024
      %1925 = vsyncadd [#allocation4], %s1924
      %s1926 = sshll.u32 [#allocation5], 4
      %s1927 = int_to_ptr.vmem [resolvable:$true] %s1926
      %1932 = dma.vmem_to_hbm [thread:$0]  %s1927, 1024, %s1, [#allocation4], 128, 128, 8
    $region13: #{tpu_custom_call.1} parent=1 // pred_fallthru
      _
    // Predicated region
    $region14: #{tpu_custom_call.1} parent=1 // pred_check
      _
    $region15: #{tpu_custom_call.1} parent=1 // pred_check_branch
      %1934 = sbr.rel (0) target = $region17
    $region16: #{tpu_custom_call.1} parent=1 // pred_region
      %1935 = dma.done [#allocation4], 1024
    $region17: #{tpu_custom_call.1} parent=1 // pred_fallthru
      _
    %1936 = vsyncpa [#allocation3], 1
    %1937 = vsyncpa [#allocation4], 1

</llo_original>
